<compile_context>
chip_gen: v7x
topology: tpu7x:2x2x1
jax: 0.10.0
libtpu: 0.0.40
codegen_flags: <defaults>
</compile_context>

<pallas_src>
import functools
import math

import jax
import jax.numpy as jnp
from jax.experimental import pallas as pl
from jax.experimental.pallas import tpu as pltpu


# ----------------------------------------------------------------------------
# In-kernel helpers
# ----------------------------------------------------------------------------
def _gelu_tanh(y):
    c = jnp.float32(math.sqrt(2.0 / math.pi))
    return 0.5 * y * (1.0 + jnp.tanh(c * (y + 0.044715 * y * y * y)))


def _layernorm(x, g, b, eps):
    mu = jnp.mean(x, axis=-1, keepdims=True)
    var = jnp.mean(jnp.square(x - mu), axis=-1, keepdims=True)
    return (x - mu) * jax.lax.rsqrt(var + eps) * g + b


def _mxu(a, b):
    # bf16 MXU inputs, f32 accumulation.
    return jnp.dot(a.astype(jnp.bfloat16), b.astype(jnp.bfloat16),
                   preferred_element_type=jnp.float32)


# ----------------------------------------------------------------------------
# Pallas kernels
# ----------------------------------------------------------------------------
def _linear_kernel(x_ref, w_ref, b_ref, o_ref):
    y = jnp.dot(x_ref[...].astype(jnp.float32), w_ref[...],
                preferred_element_type=jnp.float32) + b_ref[...]
    o_ref[...] = y.astype(o_ref.dtype)


def pallas_linear(x, w, b):
    # x: [M, K], w: [K, N], b: [1, N]
    M, K = x.shape
    N = w.shape[1]
    return pl.pallas_call(
        _linear_kernel,
        out_shape=jax.ShapeDtypeStruct((M, N), jnp.float32),
        grid=(1,),
        in_specs=[
            pl.BlockSpec((M, K), lambda i: (0, 0)),
            pl.BlockSpec((K, N), lambda i: (0, 0)),
            pl.BlockSpec((1, N), lambda i: (0, 0)),
        ],
        out_specs=pl.BlockSpec((M, N), lambda i: (0, 0)),
    )(x, w, b)


def _mlp_kernel(x_ref, w1_ref, b1_ref, ln_ref, w2_ref, b2_ref, o_ref, *, eps):
    # Linear -> LayerNorm -> GELU -> Linear fused in one kernel.
    x = x_ref[...].astype(jnp.float32)
    h = jnp.dot(x, w1_ref[...], preferred_element_type=jnp.float32) + b1_ref[...]
    ln = ln_ref[...]
    h = _gelu_tanh(_layernorm(h, ln[0:1, :], ln[1:2, :], eps))
    y = jnp.dot(h, w2_ref[...], preferred_element_type=jnp.float32) + b2_ref[...]
    o_ref[...] = y.astype(o_ref.dtype)


def pallas_mlp(x, p, eps=1e-5):
    # 1-hidden-layer MLP with layer_norm=True (Linear -> LN -> GELU -> Linear).
    M, K = x.shape
    Dhid = p["w1"].shape[1]
    N = p["w2"].shape[1]
    return pl.pallas_call(
        functools.partial(_mlp_kernel, eps=eps),
        out_shape=jax.ShapeDtypeStruct((M, N), jnp.float32),
        grid=(1,),
        in_specs=[
            pl.BlockSpec((M, K), lambda i: (0, 0)),
            pl.BlockSpec((K, Dhid), lambda i: (0, 0)),
            pl.BlockSpec((1, Dhid), lambda i: (0, 0)),
            pl.BlockSpec((2, Dhid), lambda i: (0, 0)),
            pl.BlockSpec((Dhid, N), lambda i: (0, 0)),
            pl.BlockSpec((1, N), lambda i: (0, 0)),
        ],
        out_specs=pl.BlockSpec((M, N), lambda i: (0, 0)),
    )(x, p["w1"], p["b1"], p["ln"], p["w2"], p["b2"])


def _layer_kernel(tgt_ref, te_ref, bias_ref, ln1_ref, wqk_ref, bqk_ref,
                  wv_ref, bv_ref, wo_ref, bo_ref, ln2_ref,
                  wf1_ref, bf1_ref, wf2_ref, bf2_ref, o_ref,
                  *, H, Dh, scale, eps):
    """Fully fused transformer encoder layer for one batch element."""
    d = H * Dh
    x = tgt_ref[0].astype(jnp.float32)                       # [T, d]

    # ---- LayerNorm 1 ----
    ln1 = ln1_ref[...]
    tgt2 = _layernorm(x, ln1[0:1, :], ln1[1:2, :], eps)
    qv = tgt2 + te_ref[...]                                  # query/key source

    # ---- fused Q/K projection (from qv) + V projection (from tgt2) ----
    qk = _mxu(qv, wqk_ref[...]) + bqk_ref[...]               # [T, 2d]
    v = _mxu(tgt2, wv_ref[...]) + bv_ref[...]                # [T, d]

    # ---- attention: all heads in this grid cell, lane-dense output ----
    heads = []
    for h in range(H):                                       # H static, tiny
        q_h = qk[:, h * Dh:(h + 1) * Dh]                     # [T, Dh]
        k_h = qk[:, d + h * Dh: d + (h + 1) * Dh]            # [T, Dh]
        v_h = v[:, h * Dh:(h + 1) * Dh]                      # [T, Dh]
        s = jax.lax.dot_general(
            q_h.astype(jnp.bfloat16), k_h.astype(jnp.bfloat16),
            (((1,), (1,)), ((), ())),
            preferred_element_type=jnp.float32) * scale      # [T, T]
        s = s + bias_ref[0, h]                               # rpe + key-pad mask
        s = s - jnp.max(s, axis=-1, keepdims=True)
        p = jnp.exp(s)
        p = p * pl.reciprocal(jnp.sum(p, axis=-1, keepdims=True), approx=True)
        heads.append(_mxu(p, v_h))                           # [T, Dh]
    attn = jnp.concatenate(heads, axis=-1)                   # [T, d]

    # ---- output projection + residual ----
    tgt_res = x + _mxu(attn, wo_ref[...]) + bo_ref[...]

    # ---- LayerNorm 2 + FFN + residual ----
    ln2 = ln2_ref[...]
    t2 = _layernorm(tgt_res, ln2[0:1, :], ln2[1:2, :], eps)
    ff = _gelu_tanh(_mxu(t2, wf1_ref[...]) + bf1_ref[...])
    ff = _mxu(ff, wf2_ref[...]) + bf2_ref[...]
    o_ref[0] = (tgt_res + ff).astype(o_ref.dtype)


def pallas_encoder_layer(tgt, type_embed, bias_comb, lp, *, H, Dh, eps=1e-5):
    # tgt: [B, T, d], type_embed: [T, d], bias_comb: [B, H, T, T]
    B, T, d = tgt.shape
    ffn = lp["wf1"].shape[1]
    scale = 1.0 / math.sqrt(Dh)

    def _w(shape):
        return pl.BlockSpec(shape, lambda b, _n=len(shape): (0,) * _n)

    return pl.pallas_call(
        functools.partial(_layer_kernel, H=H, Dh=Dh, scale=scale, eps=eps),
        out_shape=jax.ShapeDtypeStruct((B, T, d), jnp.float32),
        grid=(B,),
        in_specs=[
            pl.BlockSpec((1, T, d), lambda b: (b, 0, 0)),        # tgt
            pl.BlockSpec((T, d), lambda b: (0, 0)),              # type embed
            pl.BlockSpec((1, H, T, T), lambda b: (b, 0, 0, 0)),  # rpe + mask
            _w((2, d)),          # ln1 (gamma, beta)
            _w((d, 2 * d)),      # wqk
            _w((1, 2 * d)),      # bqk
            _w((d, d)),          # wv
            _w((1, d)),          # bv
            _w((d, d)),          # wo
            _w((1, d)),          # bo
            _w((2, d)),          # ln2
            _w((d, ffn)),        # wf1
            _w((1, ffn)),        # bf1
            _w((ffn, d)),        # wf2
            _w((1, d)),          # bf2
        ],
        out_specs=pl.BlockSpec((1, T, d), lambda b: (b, 0, 0)),
        compiler_params=pltpu.CompilerParams(
            dimension_semantics=("parallel",)),
    )(tgt, type_embed, bias_comb, lp["ln1"], lp["wqk"], lp["bqk"],
      lp["wv"], lp["bv"], lp["wo"], lp["bo"], lp["ln2"],
      lp["wf1"], lp["bf1"], lp["wf2"], lp["bf2"])


# ----------------------------------------------------------------------------
# Model configuration & deterministic parameter init
# ----------------------------------------------------------------------------
CFG = dict(
    layer_num=1,       # k
    n_ntype=4,
    n_etype=5,
    sent_dim=32,       # d_sentence
    d_model=64,        # args.transformer_dim
    nhead=2,           # args.num_heads
    ffn_dim=128,       # args.transformer_ffn_dim
    num_lm_tokens=8,   # L (args.max_seq_len)
    max_graph_tokens=8,
)


def init_params(key, cfg):
    d = cfg["d_model"]
    ffn = cfg["ffn_dim"]
    H = cfg["nhead"]
    T = cfg["num_lm_tokens"] + cfg["max_graph_tokens"]
    edge_in = cfg["n_etype"] + 2 * cfg["n_ntype"]  # add_nodefeatsim=False

    def dense(key, shape, scale=0.02):
        return scale * jax.random.normal(key, shape, dtype=jnp.float32)

    def ln_params():
        return jnp.stack([jnp.ones((d,), jnp.float32),
                          jnp.zeros((d,), jnp.float32)])     # [2, d]

    keys = iter(jax.random.split(key, 64))
    p = {}
    p["type_embed"] = dense(next(keys), (2, d))
    p["sent_w"] = dense(next(keys), (cfg["sent_dim"], d))
    p["sent_b"] = jnp.zeros((1, d), jnp.float32)
    # edge_encoder = Sequential(MLP(edge_in, d, d, 1, layer_norm=True))
    p["edge_enc"] = dict(
        w1=dense(next(keys), (edge_in, d)), b1=jnp.zeros((1, d), jnp.float32),
        ln=ln_params(),
        w2=dense(next(keys), (d, d)), b2=jnp.zeros((1, d), jnp.float32),
    )
    layers = []
    for _ in range(cfg["layer_num"]):
        layers.append(dict(
            ln1=ln_params(),
            wqk=dense(next(keys), (d, 2 * d)),        # [wq | wk] fused
            bqk=jnp.zeros((1, 2 * d), jnp.float32),
            wv=dense(next(keys), (d, d)), bv=jnp.zeros((1, d), jnp.float32),
            wo=dense(next(keys), (d, d)), bo=jnp.zeros((1, d), jnp.float32),
            rpe=dense(next(keys), (H, T, T)),
            ln2=ln_params(),
            wf1=dense(next(keys), (d, ffn)), bf1=jnp.zeros((1, ffn), jnp.float32),
            wf2=dense(next(keys), (ffn, d)), bf2=jnp.zeros((1, d), jnp.float32),
        ))
    p["layers"] = layers
    # qa_scorer = MLP(d, d, 1, 1, layer_norm=True)
    p["qa_scorer"] = dict(
        w1=dense(next(keys), (d, d)), b1=jnp.zeros((1, d), jnp.float32),
        ln=ln_params(),
        w2=dense(next(keys), (d, 1)), b2=jnp.zeros((1, 1), jnp.float32),
    )
    return p


# ----------------------------------------------------------------------------
# QAT forward (eval mode: all dropouts are identity, drop_ratio handling skipped)
# ----------------------------------------------------------------------------
def qat_forward(params, edge_index, edge_type, node_type_ids, lm_all_states,
                lm_mask0, token_lens, cfg):
    B = lm_all_states.shape[0]
    L = cfg["num_lm_tokens"]
    d = cfg["d_model"]
    H = cfg["nhead"]
    Dh = d // H
    max_len = cfg["max_graph_tokens"]
    T = L + max_len

    # ---- get_graph_edge_embedding ------------------------------------------
    edge_vec = jax.nn.one_hot(edge_type, cfg["n_etype"], dtype=jnp.float32)
    node_type_flat = node_type_ids.reshape(-1)
    head_vec = jax.nn.one_hot(node_type_flat[edge_index[0]], cfg["n_ntype"],
                              dtype=jnp.float32)
    tail_vec = jax.nn.one_hot(node_type_flat[edge_index[1]], cfg["n_ntype"],
                              dtype=jnp.float32)
    edge_feat = jnp.concatenate([edge_vec, head_vec, tail_vec], axis=1)  # [E, 13]
    edge_embeddings = pallas_mlp(edge_feat, params["edge_enc"])          # [E, d]

    # ---- construct_token (pad per-graph edge embeddings) --------------------
    toks, masks = [], []
    start = 0
    for length in token_lens:  # token_lens are static Python ints
        emb = edge_embeddings[start:start + length]
        emb = jnp.pad(emb, ((0, max_len - length), (0, 0)))
        toks.append(emb)
        masks.append(jnp.arange(max_len) >= length)  # True = padded/masked
        start += length
    graph_tokens = jnp.stack(toks)        # [B, max_len, d]
    graph_mask = jnp.stack(masks)         # [B, max_len]  (True = masked)

    # ---- LM tokens -----------------------------------------------------------
    lm_tokens = pallas_linear(
        lm_all_states.reshape(B * L, cfg["sent_dim"]),
        params["sent_w"], params["sent_b"]).reshape(B, L, d)
    lm_mask_bool = ~(lm_mask0.astype(bool))             # ~mask -> True = padded

    tgt = jnp.concatenate([lm_tokens, graph_tokens], axis=1)        # [B, T, d]
    tgt_mask = jnp.concatenate([lm_mask_bool, graph_mask], axis=1)  # [B, T]

    # ---- type embeddings (query/key only; value path uses raw LN output) ----
    lm_e, gr_e = params["type_embed"][0], params["type_embed"][1]
    type_embed = jnp.concatenate(
        [jnp.tile(lm_e[None, :], (L, 1)), jnp.tile(gr_e[None, :], (max_len, 1))],
        axis=0)                                                      # [T, d]

    mask_add = jnp.where(tgt_mask, -1e9, 0.0).astype(jnp.float32)    # [B, T]

    rpe = None
    for lp in params["layers"]:
        # combined additive bias: relative-position bias + key-padding mask
        bias_comb = lp["rpe"][None, :, :, :] + mask_add[:, None, None, :]
        tgt = pallas_encoder_layer(tgt, type_embed, bias_comb, lp, H=H, Dh=Dh)
        rpe = lp["rpe"]

    graph_score = pallas_mlp(tgt[:, 0, :], params["qa_scorer"])      # [B, 1]
    return graph_score, rpe


# ----------------------------------------------------------------------------
# Main
# ----------------------------------------------------------------------------
if __name__ == "__main__":
    cfg = CFG
    key = jax.random.PRNGKey(0)
    k_param, k_lm, k_et, k_ei, k_nt, k_mask = jax.random.split(key, 6)

    params = init_params(k_param, cfg)

    B = 2
    N_nodes = 8
    token_lens = (6, 8)                 # edges per graph (static)
    E = sum(token_lens)
    L = cfg["num_lm_tokens"]

    # adj = (edge_index, edge_type); edge indices point into flattened [B*N_nodes] nodes.
    heads, tails = [], []
    ei_keys = jax.random.split(k_ei, 2 * B)
    for b, length in enumerate(token_lens):
        heads.append(b * N_nodes + jax.random.randint(ei_keys[2 * b], (length,), 0, N_nodes))
        tails.append(b * N_nodes + jax.random.randint(ei_keys[2 * b + 1], (length,), 0, N_nodes))
    edge_index = jnp.stack([jnp.concatenate(heads), jnp.concatenate(tails)])      # [2, E]
    edge_type = jax.random.randint(k_et, (E,), 0, cfg["n_etype"])                  # [E]
    node_type_ids = jax.random.randint(k_nt, (B, N_nodes), 0, cfg["n_ntype"])      # [B, N]

    lm_all_states = jax.random.normal(k_lm, (B, L, cfg["sent_dim"]), dtype=jnp.float32)
    # lm_mask[0]: 1 = valid token; make trailing tokens padded.
    valid_lens = jnp.array([6, 8], dtype=jnp.int32)
    lm_mask0 = (jnp.arange(L)[None, :] < valid_lens[:, None]).astype(jnp.int32)    # [B, L]

    fwd = jax.jit(functools.partial(qat_forward, token_lens=token_lens, cfg=cfg))
    graph_score, rpe = fwd(params, edge_index, edge_type, node_type_ids,
                           lm_all_states, lm_mask0)
    jax.block_until_ready((graph_score, rpe))

    assert graph_score.shape == (B, 1)
    assert rpe.shape == (cfg["nhead"], L + cfg["max_graph_tokens"], L + cfg["max_graph_tokens"])
    assert bool(jnp.all(jnp.isfinite(graph_score)))
    print("KERNEL_OK")
</pallas_src>

<mosaic_0001>
module attributes {stable_mosaic.version = 11 : i64} {
  func.func @_linear_kernel(%arg0: i32, %arg1: memref<16x32xf32, #tpu.memory_space<vmem>>, %arg2: memref<32x64xf32, #tpu.memory_space<vmem>>, %arg3: memref<1x64xf32, #tpu.memory_space<vmem>>, %arg4: memref<16x64xf32, #tpu.memory_space<vmem>>) attributes {dimension_semantics = [#tpu.dimension_semantics<arbitrary>], iteration_bounds = array<i64: 1>, scalar_prefetch = 0 : i64, scratch_operands = 0 : i64, tpu.core_type = #tpu.core_type<tc>, window_params = [{pipeline_mode = #tpu.pipeline_mode<synchronous>, transform_indices = @transform_0, window_bounds = array<i64: 16, 32>}, {pipeline_mode = #tpu.pipeline_mode<synchronous>, transform_indices = @transform_1, window_bounds = array<i64: 32, 64>}, {pipeline_mode = #tpu.pipeline_mode<synchronous>, transform_indices = @transform_2, window_bounds = array<i64: 1, 64>}, {pipeline_mode = #tpu.pipeline_mode<synchronous>, transform_indices = @transform_3, window_bounds = array<i64: 16, 64>}]} {
    %c0 = arith.constant 0 : index
    %c0_0 = arith.constant 0 : index
    %0 = vector.load %arg1[%c0, %c0_0] : memref<16x32xf32, #tpu.memory_space<vmem>>, vector<16x32xf32>
    %c0_1 = arith.constant 0 : index
    %c0_2 = arith.constant 0 : index
    %1 = vector.load %arg2[%c0_1, %c0_2] : memref<32x64xf32, #tpu.memory_space<vmem>>, vector<32x64xf32>
    %cst = arith.constant dense<0.000000e+00> : vector<16x64xf32>
    %2 = tpu.matmul %0, %1, %cst {dimension_numbers = #tpu.dot_dimension_numbers<[1], [0], [0], [1], [0, 0, 1, 1], [], []>} : vector<16x32xf32>, vector<32x64xf32>, vector<16x64xf32> -> vector<16x64xf32>
    %c0_3 = arith.constant 0 : index
    %c0_4 = arith.constant 0 : index
    %3 = vector.load %arg3[%c0_3, %c0_4] : memref<1x64xf32, #tpu.memory_space<vmem>>, vector<1x64xf32>
    %4 = vector.broadcast %3 : vector<1x64xf32> to vector<16x64xf32>
    %5 = arith.addf %2, %4 : vector<16x64xf32>
    %c0_5 = arith.constant 0 : index
    %c0_6 = arith.constant 0 : index
    %6 = vector.load %arg4[%c0_5, %c0_6] : memref<16x64xf32, #tpu.memory_space<vmem>>, vector<16x64xf32>
    tpu.vector_store %arg4[%c0_5, %c0_6], %5 {strides = array<i32>} : memref<16x64xf32, #tpu.memory_space<vmem>>, vector<16x64xf32>,
    return
  }
  func.func @transform_0(%arg0: i32) -> (i32, i32) {
    %c0_i32 = arith.constant 0 : i32
    %c0_i32_0 = arith.constant 0 : i32
    %c0_i32_1 = arith.constant 0 : i32
    return %c0_i32, %c0_i32_0 : i32, i32
  }
  func.func @transform_1(%arg0: i32) -> (i32, i32) {
    %c0_i32 = arith.constant 0 : i32
    %c0_i32_0 = arith.constant 0 : i32
    %c0_i32_1 = arith.constant 0 : i32
    return %c0_i32, %c0_i32_0 : i32, i32
  }
  func.func @transform_2(%arg0: i32) -> (i32, i32) {
    %c0_i32 = arith.constant 0 : i32
    %c0_i32_0 = arith.constant 0 : i32
    %c0_i32_1 = arith.constant 0 : i32
    return %c0_i32, %c0_i32_0 : i32, i32
  }
  func.func @transform_3(%arg0: i32) -> (i32, i32) {
    %c0_i32 = arith.constant 0 : i32
    %c0_i32_0 = arith.constant 0 : i32
    %c0_i32_1 = arith.constant 0 : i32
    return %c0_i32, %c0_i32_0 : i32, i32
  }
}

module attributes {stable_mosaic.version = 11 : i64} {
  func.func @_mlp_kernel(%arg0: i32, %arg1: memref<14x13xf32, #tpu.memory_space<vmem>>, %arg2: memref<13x64xf32, #tpu.memory_space<vmem>>, %arg3: memref<1x64xf32, #tpu.memory_space<vmem>>, %arg4: memref<2x64xf32, #tpu.memory_space<vmem>>, %arg5: memref<64x64xf32, #tpu.memory_space<vmem>>, %arg6: memref<1x64xf32, #tpu.memory_space<vmem>>, %arg7: memref<14x64xf32, #tpu.memory_space<vmem>>) attributes {dimension_semantics = [#tpu.dimension_semantics<arbitrary>], iteration_bounds = array<i64: 1>, scalar_prefetch = 0 : i64, scratch_operands = 0 : i64, tpu.core_type = #tpu.core_type<tc>, window_params = [{pipeline_mode = #tpu.pipeline_mode<synchronous>, transform_indices = @transform_0, window_bounds = array<i64: 14, 13>}, {pipeline_mode = #tpu.pipeline_mode<synchronous>, transform_indices = @transform_1, window_bounds = array<i64: 13, 64>}, {pipeline_mode = #tpu.pipeline_mode<synchronous>, transform_indices = @transform_2, window_bounds = array<i64: 1, 64>}, {pipeline_mode = #tpu.pipeline_mode<synchronous>, transform_indices = @transform_3, window_bounds = array<i64: 2, 64>}, {pipeline_mode = #tpu.pipeline_mode<synchronous>, transform_indices = @transform_4, window_bounds = array<i64: 64, 64>}, {pipeline_mode = #tpu.pipeline_mode<synchronous>, transform_indices = @transform_5, window_bounds = array<i64: 1, 64>}, {pipeline_mode = #tpu.pipeline_mode<synchronous>, transform_indices = @transform_6, window_bounds = array<i64: 14, 64>}]} {
    %c0 = arith.constant 0 : index
    %c0_0 = arith.constant 0 : index
    %0 = vector.load %arg1[%c0, %c0_0] : memref<14x13xf32, #tpu.memory_space<vmem>>, vector<14x13xf32>
    %c0_1 = arith.constant 0 : index
    %c0_2 = arith.constant 0 : index
    %1 = vector.load %arg2[%c0_1, %c0_2] : memref<13x64xf32, #tpu.memory_space<vmem>>, vector<13x64xf32>
    %cst = arith.constant dense<0.000000e+00> : vector<14x64xf32>
    %2 = tpu.matmul %0, %1, %cst {dimension_numbers = #tpu.dot_dimension_numbers<[1], [0], [0], [1], [0, 0, 1, 1], [], []>} : vector<14x13xf32>, vector<13x64xf32>, vector<14x64xf32> -> vector<14x64xf32>
    %c0_3 = arith.constant 0 : index
    %c0_4 = arith.constant 0 : index
    %3 = vector.load %arg3[%c0_3, %c0_4] : memref<1x64xf32, #tpu.memory_space<vmem>>, vector<1x64xf32>
    %4 = vector.broadcast %3 : vector<1x64xf32> to vector<14x64xf32>
    %5 = arith.addf %2, %4 : vector<14x64xf32>
    %c0_5 = arith.constant 0 : index
    %c0_6 = arith.constant 0 : index
    %6 = vector.load %arg4[%c0_5, %c0_6] : memref<2x64xf32, #tpu.memory_space<vmem>>, vector<2x64xf32>
    %7 = vector.extract_strided_slice %6 {offsets = [0, 0], sizes = [1, 64], strides = [1, 1]} : vector<2x64xf32> to vector<1x64xf32>
    %8 = vector.extract_strided_slice %6 {offsets = [1, 0], sizes = [1, 64], strides = [1, 1]} : vector<2x64xf32> to vector<1x64xf32>
    %cst_7 = arith.constant dense<0.000000e+00> : vector<14xf32>
    %9 = vector.multi_reduction <add>, %5, %cst_7 [1] : vector<14x64xf32> to vector<14xf32>
    %10 = vector.shape_cast %9 : vector<14xf32> to vector<14x1xf32>
    %cst_8 = arith.constant 6.400000e+01 : f32
    %11 = vector.broadcast %cst_8 : f32 to vector<14x1xf32>
    %12 = arith.divf %10, %11 : vector<14x1xf32>
    %13 = vector.broadcast %12 : vector<14x1xf32> to vector<14x64xf32>
    %14 = arith.subf %5, %13 : vector<14x64xf32>
    %15 = arith.mulf %14, %14 : vector<14x64xf32>
    %cst_9 = arith.constant dense<0.000000e+00> : vector<14xf32>
    %16 = vector.multi_reduction <add>, %15, %cst_9 [1] : vector<14x64xf32> to vector<14xf32>
    %17 = vector.shape_cast %16 : vector<14xf32> to vector<14x1xf32>
    %cst_10 = arith.constant 6.400000e+01 : f32
    %18 = vector.broadcast %cst_10 : f32 to vector<14x1xf32>
    %19 = arith.divf %17, %18 : vector<14x1xf32>
    %20 = vector.broadcast %12 : vector<14x1xf32> to vector<14x64xf32>
    %21 = arith.subf %5, %20 : vector<14x64xf32>
    %cst_11 = arith.constant 9.99999974E-6 : f32
    %22 = vector.broadcast %cst_11 : f32 to vector<14x1xf32>
    %23 = arith.addf %19, %22 : vector<14x1xf32>
    %24 = math.rsqrt %23 : vector<14x1xf32>
    %25 = vector.broadcast %24 : vector<14x1xf32> to vector<14x64xf32>
    %26 = arith.mulf %21, %25 : vector<14x64xf32>
    %27 = vector.broadcast %7 : vector<1x64xf32> to vector<14x64xf32>
    %28 = arith.mulf %26, %27 : vector<14x64xf32>
    %29 = vector.broadcast %8 : vector<1x64xf32> to vector<14x64xf32>
    %30 = arith.addf %28, %29 : vector<14x64xf32>
    %cst_12 = arith.constant 5.000000e-01 : f32
    %31 = vector.broadcast %cst_12 : f32 to vector<14x64xf32>
    %32 = arith.mulf %31, %30 : vector<14x64xf32>
    %cst_13 = arith.constant 4.471500e-02 : f32
    %33 = vector.broadcast %cst_13 : f32 to vector<14x64xf32>
    %34 = arith.mulf %33, %30 : vector<14x64xf32>
    %35 = arith.mulf %34, %30 : vector<14x64xf32>
    %36 = arith.mulf %35, %30 : vector<14x64xf32>
    %37 = arith.addf %30, %36 : vector<14x64xf32>
    %cst_14 = arith.constant 0.797884583 : f32
    %38 = vector.broadcast %cst_14 : f32 to vector<14x64xf32>
    %39 = arith.mulf %38, %37 : vector<14x64xf32>
    %40 = math.tanh %39 : vector<14x64xf32>
    %cst_15 = arith.constant 1.000000e+00 : f32
    %41 = vector.broadcast %cst_15 : f32 to vector<14x64xf32>
    %42 = arith.addf %41, %40 : vector<14x64xf32>
    %43 = arith.mulf %32, %42 : vector<14x64xf32>
    %c0_16 = arith.constant 0 : index
    %c0_17 = arith.constant 0 : index
    %44 = vector.load %arg5[%c0_16, %c0_17] : memref<64x64xf32, #tpu.memory_space<vmem>>, vector<64x64xf32>
    %cst_18 = arith.constant dense<0.000000e+00> : vector<14x64xf32>
    %45 = tpu.matmul %43, %44, %cst_18 {dimension_numbers = #tpu.dot_dimension_numbers<[1], [0], [0], [1], [0, 0, 1, 1], [], []>} : vector<14x64xf32>, vector<64x64xf32>, vector<14x64xf32> -> vector<14x64xf32>
    %c0_19 = arith.constant 0 : index
    %c0_20 = arith.constant 0 : index
    %46 = vector.load %arg6[%c0_19, %c0_20] : memref<1x64xf32, #tpu.memory_space<vmem>>, vector<1x64xf32>
    %47 = vector.broadcast %46 : vector<1x64xf32> to vector<14x64xf32>
    %48 = arith.addf %45, %47 : vector<14x64xf32>
    %c0_21 = arith.constant 0 : index
    %c0_22 = arith.constant 0 : index
    %49 = vector.load %arg7[%c0_21, %c0_22] : memref<14x64xf32, #tpu.memory_space<vmem>>, vector<14x64xf32>
    tpu.vector_store %arg7[%c0_21, %c0_22], %48 {strides = array<i32>} : memref<14x64xf32, #tpu.memory_space<vmem>>, vector<14x64xf32>,
    return
  }
  func.func @transform_0(%arg0: i32) -> (i32, i32) {
    %c0_i32 = arith.constant 0 : i32
    %c0_i32_0 = arith.constant 0 : i32
    %c0_i32_1 = arith.constant 0 : i32
    return %c0_i32, %c0_i32_0 : i32, i32
  }
  func.func @transform_1(%arg0: i32) -> (i32, i32) {
    %c0_i32 = arith.constant 0 : i32
    %c0_i32_0 = arith.constant 0 : i32
    %c0_i32_1 = arith.constant 0 : i32
    return %c0_i32, %c0_i32_0 : i32, i32
  }
  func.func @transform_2(%arg0: i32) -> (i32, i32) {
    %c0_i32 = arith.constant 0 : i32
    %c0_i32_0 = arith.constant 0 : i32
    %c0_i32_1 = arith.constant 0 : i32
    return %c0_i32, %c0_i32_0 : i32, i32
  }
  func.func @transform_3(%arg0: i32) -> (i32, i32) {
    %c0_i32 = arith.constant 0 : i32
    %c0_i32_0 = arith.constant 0 : i32
    %c0_i32_1 = arith.constant 0 : i32
    return %c0_i32, %c0_i32_0 : i32, i32
  }
  func.func @transform_4(%arg0: i32) -> (i32, i32) {
    %c0_i32 = arith.constant 0 : i32
    %c0_i32_0 = arith.constant 0 : i32
    %c0_i32_1 = arith.constant 0 : i32
    return %c0_i32, %c0_i32_0 : i32, i32
  }
  func.func @transform_5(%arg0: i32) -> (i32, i32) {
    %c0_i32 = arith.constant 0 : i32
    %c0_i32_0 = arith.constant 0 : i32
    %c0_i32_1 = arith.constant 0 : i32
    return %c0_i32, %c0_i32_0 : i32, i32
  }
  func.func @transform_6(%arg0: i32) -> (i32, i32) {
    %c0_i32 = arith.constant 0 : i32
    %c0_i32_0 = arith.constant 0 : i32
    %c0_i32_1 = arith.constant 0 : i32
    return %c0_i32, %c0_i32_0 : i32, i32
  }
}

module attributes {stable_mosaic.version = 11 : i64} {
  func.func @_layer_kernel(%arg0: i32, %arg1: memref<1x16x64xf32, #tpu.memory_space<vmem>>, %arg2: memref<16x64xf32, #tpu.memory_space<vmem>>, %arg3: memref<1x2x16x16xf32, #tpu.memory_space<vmem>>, %arg4: memref<2x64xf32, #tpu.memory_space<vmem>>, %arg5: memref<64x128xf32, #tpu.memory_space<vmem>>, %arg6: memref<1x128xf32, #tpu.memory_space<vmem>>, %arg7: memref<64x64xf32, #tpu.memory_space<vmem>>, %arg8: memref<1x64xf32, #tpu.memory_space<vmem>>, %arg9: memref<64x64xf32, #tpu.memory_space<vmem>>, %arg10: memref<1x64xf32, #tpu.memory_space<vmem>>, %arg11: memref<2x64xf32, #tpu.memory_space<vmem>>, %arg12: memref<64x128xf32, #tpu.memory_space<vmem>>, %arg13: memref<1x128xf32, #tpu.memory_space<vmem>>, %arg14: memref<128x64xf32, #tpu.memory_space<vmem>>, %arg15: memref<1x64xf32, #tpu.memory_space<vmem>>, %arg16: memref<1x16x64xf32, #tpu.memory_space<vmem>>) attributes {dimension_semantics = [#tpu.dimension_semantics<parallel>], iteration_bounds = array<i64: 2>, scalar_prefetch = 0 : i64, scratch_operands = 0 : i64, tpu.core_type = #tpu.core_type<tc>, window_params = [{transform_indices = @transform_0, window_bounds = array<i64: 1, 16, 64>}, {pipeline_mode = #tpu.pipeline_mode<synchronous>, transform_indices = @transform_1, window_bounds = array<i64: 16, 64>}, {transform_indices = @transform_2, window_bounds = array<i64: 1, 2, 16, 16>}, {pipeline_mode = #tpu.pipeline_mode<synchronous>, transform_indices = @transform_3, window_bounds = array<i64: 2, 64>}, {pipeline_mode = #tpu.pipeline_mode<synchronous>, transform_indices = @transform_4, window_bounds = array<i64: 64, 128>}, {pipeline_mode = #tpu.pipeline_mode<synchronous>, transform_indices = @transform_5, window_bounds = array<i64: 1, 128>}, {pipeline_mode = #tpu.pipeline_mode<synchronous>, transform_indices = @transform_6, window_bounds = array<i64: 64, 64>}, {pipeline_mode = #tpu.pipeline_mode<synchronous>, transform_indices = @transform_7, window_bounds = array<i64: 1, 64>}, {pipeline_mode = #tpu.pipeline_mode<synchronous>, transform_indices = @transform_8, window_bounds = array<i64: 64, 64>}, {pipeline_mode = #tpu.pipeline_mode<synchronous>, transform_indices = @transform_9, window_bounds = array<i64: 1, 64>}, {pipeline_mode = #tpu.pipeline_mode<synchronous>, transform_indices = @transform_10, window_bounds = array<i64: 2, 64>}, {pipeline_mode = #tpu.pipeline_mode<synchronous>, transform_indices = @transform_11, window_bounds = array<i64: 64, 128>}, {pipeline_mode = #tpu.pipeline_mode<synchronous>, transform_indices = @transform_12, window_bounds = array<i64: 1, 128>}, {pipeline_mode = #tpu.pipeline_mode<synchronous>, transform_indices = @transform_13, window_bounds = array<i64: 128, 64>}, {pipeline_mode = #tpu.pipeline_mode<synchronous>, transform_indices = @transform_14, window_bounds = array<i64: 1, 64>}, {transform_indices = @transform_15, window_bounds = array<i64: 1, 16, 64>}]} {
    %c0 = arith.constant 0 : index
    %c0_0 = arith.constant 0 : index
    %c0_1 = arith.constant 0 : index
    %0 = vector.load %arg1[%c0, %c0_0, %c0_1] : memref<1x16x64xf32, #tpu.memory_space<vmem>>, vector<1x16x64xf32>
    %1 = vector.shape_cast %0 : vector<1x16x64xf32> to vector<16x64xf32>
    %c0_2 = arith.constant 0 : index
    %c0_3 = arith.constant 0 : index
    %2 = vector.load %arg4[%c0_2, %c0_3] : memref<2x64xf32, #tpu.memory_space<vmem>>, vector<2x64xf32>
    %3 = vector.extract_strided_slice %2 {offsets = [0, 0], sizes = [1, 64], strides = [1, 1]} : vector<2x64xf32> to vector<1x64xf32>
    %4 = vector.extract_strided_slice %2 {offsets = [1, 0], sizes = [1, 64], strides = [1, 1]} : vector<2x64xf32> to vector<1x64xf32>
    %cst = arith.constant dense<0.000000e+00> : vector<16xf32>
    %5 = vector.multi_reduction <add>, %1, %cst [1] : vector<16x64xf32> to vector<16xf32>
    %6 = vector.shape_cast %5 : vector<16xf32> to vector<16x1xf32>
    %cst_4 = arith.constant 6.400000e+01 : f32
    %7 = vector.broadcast %cst_4 : f32 to vector<16x1xf32>
    %8 = arith.divf %6, %7 : vector<16x1xf32>
    %9 = vector.broadcast %8 : vector<16x1xf32> to vector<16x64xf32>
    %10 = arith.subf %1, %9 : vector<16x64xf32>
    %11 = arith.mulf %10, %10 : vector<16x64xf32>
    %cst_5 = arith.constant dense<0.000000e+00> : vector<16xf32>
    %12 = vector.multi_reduction <add>, %11, %cst_5 [1] : vector<16x64xf32> to vector<16xf32>
    %13 = vector.shape_cast %12 : vector<16xf32> to vector<16x1xf32>
    %cst_6 = arith.constant 6.400000e+01 : f32
    %14 = vector.broadcast %cst_6 : f32 to vector<16x1xf32>
    %15 = arith.divf %13, %14 : vector<16x1xf32>
    %16 = vector.broadcast %8 : vector<16x1xf32> to vector<16x64xf32>
    %17 = arith.subf %1, %16 : vector<16x64xf32>
    %cst_7 = arith.constant 9.99999974E-6 : f32
    %18 = vector.broadcast %cst_7 : f32 to vector<16x1xf32>
    %19 = arith.addf %15, %18 : vector<16x1xf32>
    %20 = math.rsqrt %19 : vector<16x1xf32>
    %21 = vector.broadcast %20 : vector<16x1xf32> to vector<16x64xf32>
    %22 = arith.mulf %17, %21 : vector<16x64xf32>
    %23 = vector.broadcast %3 : vector<1x64xf32> to vector<16x64xf32>
    %24 = arith.mulf %22, %23 : vector<16x64xf32>
    %25 = vector.broadcast %4 : vector<1x64xf32> to vector<16x64xf32>
    %26 = arith.addf %24, %25 : vector<16x64xf32>
    %c0_8 = arith.constant 0 : index
    %c0_9 = arith.constant 0 : index
    %27 = vector.load %arg2[%c0_8, %c0_9] : memref<16x64xf32, #tpu.memory_space<vmem>>, vector<16x64xf32>
    %28 = arith.addf %26, %27 : vector<16x64xf32>
    %c0_10 = arith.constant 0 : index
    %c0_11 = arith.constant 0 : index
    %29 = vector.load %arg5[%c0_10, %c0_11] : memref<64x128xf32, #tpu.memory_space<vmem>>, vector<64x128xf32>
    %30 = arith.truncf %28 : vector<16x64xf32> to vector<16x64xbf16>
    %31 = arith.truncf %29 : vector<64x128xf32> to vector<64x128xbf16>
    %cst_12 = arith.constant dense<0.000000e+00> : vector<16x128xf32>
    %32 = tpu.matmul %30, %31, %cst_12 {dimension_numbers = #tpu.dot_dimension_numbers<[1], [0], [0], [1], [0, 0, 1, 1], [], []>} : vector<16x64xbf16>, vector<64x128xbf16>, vector<16x128xf32> -> vector<16x128xf32>
    %c0_13 = arith.constant 0 : index
    %c0_14 = arith.constant 0 : index
    %33 = vector.load %arg6[%c0_13, %c0_14] : memref<1x128xf32, #tpu.memory_space<vmem>>, vector<1x128xf32>
    %34 = vector.broadcast %33 : vector<1x128xf32> to vector<16x128xf32>
    %35 = arith.addf %32, %34 : vector<16x128xf32>
    %c0_15 = arith.constant 0 : index
    %c0_16 = arith.constant 0 : index
    %36 = vector.load %arg7[%c0_15, %c0_16] : memref<64x64xf32, #tpu.memory_space<vmem>>, vector<64x64xf32>
    %37 = arith.truncf %26 : vector<16x64xf32> to vector<16x64xbf16>
    %38 = arith.truncf %36 : vector<64x64xf32> to vector<64x64xbf16>
    %cst_17 = arith.constant dense<0.000000e+00> : vector<16x64xf32>
    %39 = tpu.matmul %37, %38, %cst_17 {dimension_numbers = #tpu.dot_dimension_numbers<[1], [0], [0], [1], [0, 0, 1, 1], [], []>} : vector<16x64xbf16>, vector<64x64xbf16>, vector<16x64xf32> -> vector<16x64xf32>
    %c0_18 = arith.constant 0 : index
    %c0_19 = arith.constant 0 : index
    %40 = vector.load %arg8[%c0_18, %c0_19] : memref<1x64xf32, #tpu.memory_space<vmem>>, vector<1x64xf32>
    %41 = vector.broadcast %40 : vector<1x64xf32> to vector<16x64xf32>
    %42 = arith.addf %39, %41 : vector<16x64xf32>
    %43 = vector.extract_strided_slice %35 {offsets = [0, 0], sizes = [16, 32], strides = [1, 1]} : vector<16x128xf32> to vector<16x32xf32>
    %44 = vector.extract_strided_slice %35 {offsets = [0, 64], sizes = [16, 32], strides = [1, 1]} : vector<16x128xf32> to vector<16x32xf32>
    %45 = vector.extract_strided_slice %42 {offsets = [0, 0], sizes = [16, 32], strides = [1, 1]} : vector<16x64xf32> to vector<16x32xf32>
    %46 = arith.truncf %43 : vector<16x32xf32> to vector<16x32xbf16>
    %47 = arith.truncf %44 : vector<16x32xf32> to vector<16x32xbf16>
    %cst_20 = arith.constant dense<0.000000e+00> : vector<16x16xf32>
    %48 = tpu.matmul %46, %47, %cst_20 {dimension_numbers = #tpu.dot_dimension_numbers<[1], [1], [0], [0], [0, 0, 1, 0], [], []>} : vector<16x32xbf16>, vector<16x32xbf16>, vector<16x16xf32> -> vector<16x16xf32>
    %cst_21 = arith.constant 0.176776692 : f32
    %49 = vector.broadcast %cst_21 : f32 to vector<16x16xf32>
    %50 = arith.mulf %48, %49 : vector<16x16xf32>
    %c0_22 = arith.constant 0 : index
    %c0_23 = arith.constant 0 : index
    %c0_24 = arith.constant 0 : index
    %c0_25 = arith.constant 0 : index
    %51 = vector.load %arg3[%c0_22, %c0_23, %c0_24, %c0_25] : memref<1x2x16x16xf32, #tpu.memory_space<vmem>>, vector<1x1x16x16xf32>
    %52 = vector.shape_cast %51 : vector<1x1x16x16xf32> to vector<16x16xf32>
    %53 = arith.addf %50, %52 : vector<16x16xf32>
    %cst_26 = arith.constant dense<0xFF800000> : vector<16xf32>
    %54 = vector.multi_reduction <maximumf>, %53, %cst_26 [1] : vector<16x16xf32> to vector<16xf32>
    %55 = vector.shape_cast %54 : vector<16xf32> to vector<16x1xf32>
    %56 = vector.broadcast %55 : vector<16x1xf32> to vector<16x16xf32>
    %57 = arith.subf %53, %56 : vector<16x16xf32>
    %58 = math.exp %57 : vector<16x16xf32>
    %cst_27 = arith.constant dense<0.000000e+00> : vector<16xf32>
    %59 = vector.multi_reduction <add>, %58, %cst_27 [1] : vector<16x16xf32> to vector<16xf32>
    %60 = vector.shape_cast %59 : vector<16xf32> to vector<16x1xf32>
    %61 = tpu.reciprocal %60 {approx = true} : vector<16x1xf32> -> vector<16x1xf32>
    %62 = vector.broadcast %61 : vector<16x1xf32> to vector<16x16xf32>
    %63 = arith.mulf %58, %62 : vector<16x16xf32>
    %64 = arith.truncf %63 : vector<16x16xf32> to vector<16x16xbf16>
    %65 = arith.truncf %45 : vector<16x32xf32> to vector<16x32xbf16>
    %cst_28 = arith.constant dense<0.000000e+00> : vector<16x32xf32>
    %66 = tpu.matmul %64, %65, %cst_28 {dimension_numbers = #tpu.dot_dimension_numbers<[1], [0], [0], [1], [0, 0, 1, 1], [], []>} : vector<16x16xbf16>, vector<16x32xbf16>, vector<16x32xf32> -> vector<16x32xf32>
    %67 = vector.extract_strided_slice %35 {offsets = [0, 32], sizes = [16, 32], strides = [1, 1]} : vector<16x128xf32> to vector<16x32xf32>
    %68 = vector.extract_strided_slice %35 {offsets = [0, 96], sizes = [16, 32], strides = [1, 1]} : vector<16x128xf32> to vector<16x32xf32>
    %69 = vector.extract_strided_slice %42 {offsets = [0, 32], sizes = [16, 32], strides = [1, 1]} : vector<16x64xf32> to vector<16x32xf32>
    %70 = arith.truncf %67 : vector<16x32xf32> to vector<16x32xbf16>
    %71 = arith.truncf %68 : vector<16x32xf32> to vector<16x32xbf16>
    %cst_29 = arith.constant dense<0.000000e+00> : vector<16x16xf32>
    %72 = tpu.matmul %70, %71, %cst_29 {dimension_numbers = #tpu.dot_dimension_numbers<[1], [1], [0], [0], [0, 0, 1, 0], [], []>} : vector<16x32xbf16>, vector<16x32xbf16>, vector<16x16xf32> -> vector<16x16xf32>
    %cst_30 = arith.constant 0.176776692 : f32
    %73 = vector.broadcast %cst_30 : f32 to vector<16x16xf32>
    %74 = arith.mulf %72, %73 : vector<16x16xf32>
    %c0_31 = arith.constant 0 : index
    %c1 = arith.constant 1 : index
    %c0_32 = arith.constant 0 : index
    %c0_33 = arith.constant 0 : index
    %75 = vector.load %arg3[%c0_31, %c1, %c0_32, %c0_33] : memref<1x2x16x16xf32, #tpu.memory_space<vmem>>, vector<1x1x16x16xf32>
    %76 = vector.shape_cast %75 : vector<1x1x16x16xf32> to vector<16x16xf32>
    %77 = arith.addf %74, %76 : vector<16x16xf32>
    %cst_34 = arith.constant dense<0xFF800000> : vector<16xf32>
    %78 = vector.multi_reduction <maximumf>, %77, %cst_34 [1] : vector<16x16xf32> to vector<16xf32>
    %79 = vector.shape_cast %78 : vector<16xf32> to vector<16x1xf32>
    %80 = vector.broadcast %79 : vector<16x1xf32> to vector<16x16xf32>
    %81 = arith.subf %77, %80 : vector<16x16xf32>
    %82 = math.exp %81 : vector<16x16xf32>
    %cst_35 = arith.constant dense<0.000000e+00> : vector<16xf32>
    %83 = vector.multi_reduction <add>, %82, %cst_35 [1] : vector<16x16xf32> to vector<16xf32>
    %84 = vector.shape_cast %83 : vector<16xf32> to vector<16x1xf32>
    %85 = tpu.reciprocal %84 {approx = true} : vector<16x1xf32> -> vector<16x1xf32>
    %86 = vector.broadcast %85 : vector<16x1xf32> to vector<16x16xf32>
    %87 = arith.mulf %82, %86 : vector<16x16xf32>
    %88 = arith.truncf %87 : vector<16x16xf32> to vector<16x16xbf16>
    %89 = arith.truncf %69 : vector<16x32xf32> to vector<16x32xbf16>
    %cst_36 = arith.constant dense<0.000000e+00> : vector<16x32xf32>
    %90 = tpu.matmul %88, %89, %cst_36 {dimension_numbers = #tpu.dot_dimension_numbers<[1], [0], [0], [1], [0, 0, 1, 1], [], []>} : vector<16x16xbf16>, vector<16x32xbf16>, vector<16x32xf32> -> vector<16x32xf32>
    %91 = tpu.concatenate %66, %90 in 1 : vector<16x32xf32>, vector<16x32xf32> -> vector<16x64xf32>
    %c0_37 = arith.constant 0 : index
    %c0_38 = arith.constant 0 : index
    %92 = vector.load %arg9[%c0_37, %c0_38] : memref<64x64xf32, #tpu.memory_space<vmem>>, vector<64x64xf32>
    %93 = arith.truncf %91 : vector<16x64xf32> to vector<16x64xbf16>
    %94 = arith.truncf %92 : vector<64x64xf32> to vector<64x64xbf16>
    %cst_39 = arith.constant dense<0.000000e+00> : vector<16x64xf32>
    %95 = tpu.matmul %93, %94, %cst_39 {dimension_numbers = #tpu.dot_dimension_numbers<[1], [0], [0], [1], [0, 0, 1, 1], [], []>} : vector<16x64xbf16>, vector<64x64xbf16>, vector<16x64xf32> -> vector<16x64xf32>
    %96 = arith.addf %1, %95 : vector<16x64xf32>
    %c0_40 = arith.constant 0 : index
    %c0_41 = arith.constant 0 : index
    %97 = vector.load %arg10[%c0_40, %c0_41] : memref<1x64xf32, #tpu.memory_space<vmem>>, vector<1x64xf32>
    %98 = vector.broadcast %97 : vector<1x64xf32> to vector<16x64xf32>
    %99 = arith.addf %96, %98 : vector<16x64xf32>
    %c0_42 = arith.constant 0 : index
    %c0_43 = arith.constant 0 : index
    %100 = vector.load %arg11[%c0_42, %c0_43] : memref<2x64xf32, #tpu.memory_space<vmem>>, vector<2x64xf32>
    %101 = vector.extract_strided_slice %100 {offsets = [0, 0], sizes = [1, 64], strides = [1, 1]} : vector<2x64xf32> to vector<1x64xf32>
    %102 = vector.extract_strided_slice %100 {offsets = [1, 0], sizes = [1, 64], strides = [1, 1]} : vector<2x64xf32> to vector<1x64xf32>
    %cst_44 = arith.constant dense<0.000000e+00> : vector<16xf32>
    %103 = vector.multi_reduction <add>, %99, %cst_44 [1] : vector<16x64xf32> to vector<16xf32>
    %104 = vector.shape_cast %103 : vector<16xf32> to vector<16x1xf32>
    %cst_45 = arith.constant 6.400000e+01 : f32
    %105 = vector.broadcast %cst_45 : f32 to vector<16x1xf32>
    %106 = arith.divf %104, %105 : vector<16x1xf32>
    %107 = vector.broadcast %106 : vector<16x1xf32> to vector<16x64xf32>
    %108 = arith.subf %99, %107 : vector<16x64xf32>
    %109 = arith.mulf %108, %108 : vector<16x64xf32>
    %cst_46 = arith.constant dense<0.000000e+00> : vector<16xf32>
    %110 = vector.multi_reduction <add>, %109, %cst_46 [1] : vector<16x64xf32> to vector<16xf32>
    %111 = vector.shape_cast %110 : vector<16xf32> to vector<16x1xf32>
    %cst_47 = arith.constant 6.400000e+01 : f32
    %112 = vector.broadcast %cst_47 : f32 to vector<16x1xf32>
    %113 = arith.divf %111, %112 : vector<16x1xf32>
    %114 = vector.broadcast %106 : vector<16x1xf32> to vector<16x64xf32>
    %115 = arith.subf %99, %114 : vector<16x64xf32>
    %cst_48 = arith.constant 9.99999974E-6 : f32
    %116 = vector.broadcast %cst_48 : f32 to vector<16x1xf32>
    %117 = arith.addf %113, %116 : vector<16x1xf32>
    %118 = math.rsqrt %117 : vector<16x1xf32>
    %119 = vector.broadcast %118 : vector<16x1xf32> to vector<16x64xf32>
    %120 = arith.mulf %115, %119 : vector<16x64xf32>
    %121 = vector.broadcast %101 : vector<1x64xf32> to vector<16x64xf32>
    %122 = arith.mulf %120, %121 : vector<16x64xf32>
    %123 = vector.broadcast %102 : vector<1x64xf32> to vector<16x64xf32>
    %124 = arith.addf %122, %123 : vector<16x64xf32>
    %c0_49 = arith.constant 0 : index
    %c0_50 = arith.constant 0 : index
    %125 = vector.load %arg12[%c0_49, %c0_50] : memref<64x128xf32, #tpu.memory_space<vmem>>, vector<64x128xf32>
    %126 = arith.truncf %124 : vector<16x64xf32> to vector<16x64xbf16>
    %127 = arith.truncf %125 : vector<64x128xf32> to vector<64x128xbf16>
    %cst_51 = arith.constant dense<0.000000e+00> : vector<16x128xf32>
    %128 = tpu.matmul %126, %127, %cst_51 {dimension_numbers = #tpu.dot_dimension_numbers<[1], [0], [0], [1], [0, 0, 1, 1], [], []>} : vector<16x64xbf16>, vector<64x128xbf16>, vector<16x128xf32> -> vector<16x128xf32>
    %c0_52 = arith.constant 0 : index
    %c0_53 = arith.constant 0 : index
    %129 = vector.load %arg13[%c0_52, %c0_53] : memref<1x128xf32, #tpu.memory_space<vmem>>, vector<1x128xf32>
    %130 = vector.broadcast %129 : vector<1x128xf32> to vector<16x128xf32>
    %131 = arith.addf %128, %130 : vector<16x128xf32>
    %cst_54 = arith.constant 5.000000e-01 : f32
    %132 = vector.broadcast %cst_54 : f32 to vector<16x128xf32>
    %133 = arith.mulf %132, %131 : vector<16x128xf32>
    %cst_55 = arith.constant 4.471500e-02 : f32
    %134 = vector.broadcast %cst_55 : f32 to vector<16x128xf32>
    %135 = arith.mulf %134, %131 : vector<16x128xf32>
    %136 = arith.mulf %135, %131 : vector<16x128xf32>
    %137 = arith.mulf %136, %131 : vector<16x128xf32>
    %138 = arith.addf %131, %137 : vector<16x128xf32>
    %cst_56 = arith.constant 0.797884583 : f32
    %139 = vector.broadcast %cst_56 : f32 to vector<16x128xf32>
    %140 = arith.mulf %139, %138 : vector<16x128xf32>
    %141 = math.tanh %140 : vector<16x128xf32>
    %cst_57 = arith.constant 1.000000e+00 : f32
    %142 = vector.broadcast %cst_57 : f32 to vector<16x128xf32>
    %143 = arith.addf %142, %141 : vector<16x128xf32>
    %144 = arith.mulf %133, %143 : vector<16x128xf32>
    %c0_58 = arith.constant 0 : index
    %c0_59 = arith.constant 0 : index
    %145 = vector.load %arg14[%c0_58, %c0_59] : memref<128x64xf32, #tpu.memory_space<vmem>>, vector<128x64xf32>
    %146 = arith.truncf %144 : vector<16x128xf32> to vector<16x128xbf16>
    %147 = arith.truncf %145 : vector<128x64xf32> to vector<128x64xbf16>
    %cst_60 = arith.constant dense<0.000000e+00> : vector<16x64xf32>
    %148 = tpu.matmul %146, %147, %cst_60 {dimension_numbers = #tpu.dot_dimension_numbers<[1], [0], [0], [1], [0, 0, 1, 1], [], []>} : vector<16x128xbf16>, vector<128x64xbf16>, vector<16x64xf32> -> vector<16x64xf32>
    %c0_61 = arith.constant 0 : index
    %c0_62 = arith.constant 0 : index
    %149 = vector.load %arg15[%c0_61, %c0_62] : memref<1x64xf32, #tpu.memory_space<vmem>>, vector<1x64xf32>
    %150 = vector.broadcast %149 : vector<1x64xf32> to vector<16x64xf32>
    %151 = arith.addf %148, %150 : vector<16x64xf32>
    %152 = arith.addf %99, %151 : vector<16x64xf32>
    %c0_63 = arith.constant 0 : index
    %c0_64 = arith.constant 0 : index
    %c0_65 = arith.constant 0 : index
    %153 = vector.load %arg16[%c0_63, %c0_64, %c0_65] : memref<1x16x64xf32, #tpu.memory_space<vmem>>, vector<1x16x64xf32>
    %154 = vector.shape_cast %153 : vector<1x16x64xf32> to vector<16x64xf32>
    %155 = vector.shape_cast %152 : vector<16x64xf32> to vector<1x16x64xf32>
    tpu.vector_store %arg16[%c0_63, %c0_64, %c0_65], %155 {strides = array<i32>} : memref<1x16x64xf32, #tpu.memory_space<vmem>>, vector<1x16x64xf32>,
    return
  }
  func.func @transform_0(%arg0: i32) -> (i32, i32, i32) {
    %c0_i32 = arith.constant 0 : i32
    %c0_i32_0 = arith.constant 0 : i32
    %c0_i32_1 = arith.constant 0 : i32
    return %arg0, %c0_i32, %c0_i32_0 : i32, i32, i32
  }
  func.func @transform_1(%arg0: i32) -> (i32, i32) {
    %c0_i32 = arith.constant 0 : i32
    %c0_i32_0 = arith.constant 0 : i32
    %c0_i32_1 = arith.constant 0 : i32
    return %c0_i32, %c0_i32_0 : i32, i32
  }
  func.func @transform_2(%arg0: i32) -> (i32, i32, i32, i32) {
    %c0_i32 = arith.constant 0 : i32
    %c0_i32_0 = arith.constant 0 : i32
    %c0_i32_1 = arith.constant 0 : i32
    %c0_i32_2 = arith.constant 0 : i32
    return %arg0, %c0_i32, %c0_i32_0, %c0_i32_1 : i32, i32, i32, i32
  }
  func.func @transform_3(%arg0: i32) -> (i32, i32) {
    %c0_i32 = arith.constant 0 : i32
    %c0_i32_0 = arith.constant 0 : i32
    %c0_i32_1 = arith.constant 0 : i32
    return %c0_i32, %c0_i32_0 : i32, i32
  }
  func.func @transform_4(%arg0: i32) -> (i32, i32) {
    %c0_i32 = arith.constant 0 : i32
    %c0_i32_0 = arith.constant 0 : i32
    %c0_i32_1 = arith.constant 0 : i32
    return %c0_i32, %c0_i32_0 : i32, i32
  }
  func.func @transform_5(%arg0: i32) -> (i32, i32) {
    %c0_i32 = arith.constant 0 : i32
    %c0_i32_0 = arith.constant 0 : i32
    %c0_i32_1 = arith.constant 0 : i32
    return %c0_i32, %c0_i32_0 : i32, i32
  }
  func.func @transform_6(%arg0: i32) -> (i32, i32) {
    %c0_i32 = arith.constant 0 : i32
    %c0_i32_0 = arith.constant 0 : i32
    %c0_i32_1 = arith.constant 0 : i32
    return %c0_i32, %c0_i32_0 : i32, i32
  }
  func.func @transform_7(%arg0: i32) -> (i32, i32) {
    %c0_i32 = arith.constant 0 : i32
    %c0_i32_0 = arith.constant 0 : i32
    %c0_i32_1 = arith.constant 0 : i32
    return %c0_i32, %c0_i32_0 : i32, i32
  }
  func.func @transform_8(%arg0: i32) -> (i32, i32) {
    %c0_i32 = arith.constant 0 : i32
    %c0_i32_0 = arith.constant 0 : i32
    %c0_i32_1 = arith.constant 0 : i32
    return %c0_i32, %c0_i32_0 : i32, i32
  }
  func.func @transform_9(%arg0: i32) -> (i32, i32) {
    %c0_i32 = arith.constant 0 : i32
    %c0_i32_0 = arith.constant 0 : i32
    %c0_i32_1 = arith.constant 0 : i32
    return %c0_i32, %c0_i32_0 : i32, i32
  }
  func.func @transform_10(%arg0: i32) -> (i32, i32) {
    %c0_i32 = arith.constant 0 : i32
    %c0_i32_0 = arith.constant 0 : i32
    %c0_i32_1 = arith.constant 0 : i32
    return %c0_i32, %c0_i32_0 : i32, i32
  }
  func.func @transform_11(%arg0: i32) -> (i32, i32) {
    %c0_i32 = arith.constant 0 : i32
    %c0_i32_0 = arith.constant 0 : i32
    %c0_i32_1 = arith.constant 0 : i32
    return %c0_i32, %c0_i32_0 : i32, i32
  }
  func.func @transform_12(%arg0: i32) -> (i32, i32) {
    %c0_i32 = arith.constant 0 : i32
    %c0_i32_0 = arith.constant 0 : i32
    %c0_i32_1 = arith.constant 0 : i32
    return %c0_i32, %c0_i32_0 : i32, i32
  }
  func.func @transform_13(%arg0: i32) -> (i32, i32) {
    %c0_i32 = arith.constant 0 : i32
    %c0_i32_0 = arith.constant 0 : i32
    %c0_i32_1 = arith.constant 0 : i32
    return %c0_i32, %c0_i32_0 : i32, i32
  }
  func.func @transform_14(%arg0: i32) -> (i32, i32) {
    %c0_i32 = arith.constant 0 : i32
    %c0_i32_0 = arith.constant 0 : i32
    %c0_i32_1 = arith.constant 0 : i32
    return %c0_i32, %c0_i32_0 : i32, i32
  }
  func.func @transform_15(%arg0: i32) -> (i32, i32, i32) {
    %c0_i32 = arith.constant 0 : i32
    %c0_i32_0 = arith.constant 0 : i32
    %c0_i32_1 = arith.constant 0 : i32
    return %arg0, %c0_i32, %c0_i32_0 : i32, i32, i32
  }
}

module attributes {stable_mosaic.version = 11 : i64} {
  func.func @_mlp_kernel(%arg0: i32, %arg1: memref<2x64xf32, #tpu.memory_space<vmem>>, %arg2: memref<64x64xf32, #tpu.memory_space<vmem>>, %arg3: memref<1x64xf32, #tpu.memory_space<vmem>>, %arg4: memref<2x64xf32, #tpu.memory_space<vmem>>, %arg5: memref<64x1xf32, #tpu.memory_space<vmem>>, %arg6: memref<1x1xf32, #tpu.memory_space<vmem>>, %arg7: memref<2x1xf32, #tpu.memory_space<vmem>>) attributes {dimension_semantics = [#tpu.dimension_semantics<arbitrary>], iteration_bounds = array<i64: 1>, scalar_prefetch = 0 : i64, scratch_operands = 0 : i64, tpu.core_type = #tpu.core_type<tc>, window_params = [{pipeline_mode = #tpu.pipeline_mode<synchronous>, transform_indices = @transform_0, window_bounds = array<i64: 2, 64>}, {pipeline_mode = #tpu.pipeline_mode<synchronous>, transform_indices = @transform_1, window_bounds = array<i64: 64, 64>}, {pipeline_mode = #tpu.pipeline_mode<synchronous>, transform_indices = @transform_2, window_bounds = array<i64: 1, 64>}, {pipeline_mode = #tpu.pipeline_mode<synchronous>, transform_indices = @transform_3, window_bounds = array<i64: 2, 64>}, {pipeline_mode = #tpu.pipeline_mode<synchronous>, transform_indices = @transform_4, window_bounds = array<i64: 64, 1>}, {pipeline_mode = #tpu.pipeline_mode<synchronous>, transform_indices = @transform_5, window_bounds = array<i64: 1, 1>}, {pipeline_mode = #tpu.pipeline_mode<synchronous>, transform_indices = @transform_6, window_bounds = array<i64: 2, 1>}]} {
    %c0 = arith.constant 0 : index
    %c0_0 = arith.constant 0 : index
    %0 = vector.load %arg1[%c0, %c0_0] : memref<2x64xf32, #tpu.memory_space<vmem>>, vector<2x64xf32>
    %c0_1 = arith.constant 0 : index
    %c0_2 = arith.constant 0 : index
    %1 = vector.load %arg2[%c0_1, %c0_2] : memref<64x64xf32, #tpu.memory_space<vmem>>, vector<64x64xf32>
    %cst = arith.constant dense<0.000000e+00> : vector<2x64xf32>
    %2 = tpu.matmul %0, %1, %cst {dimension_numbers = #tpu.dot_dimension_numbers<[1], [0], [0], [1], [0, 0, 1, 1], [], []>} : vector<2x64xf32>, vector<64x64xf32>, vector<2x64xf32> -> vector<2x64xf32>
    %c0_3 = arith.constant 0 : index
    %c0_4 = arith.constant 0 : index
    %3 = vector.load %arg3[%c0_3, %c0_4] : memref<1x64xf32, #tpu.memory_space<vmem>>, vector<1x64xf32>
    %4 = vector.broadcast %3 : vector<1x64xf32> to vector<2x64xf32>
    %5 = arith.addf %2, %4 : vector<2x64xf32>
    %c0_5 = arith.constant 0 : index
    %c0_6 = arith.constant 0 : index
    %6 = vector.load %arg4[%c0_5, %c0_6] : memref<2x64xf32, #tpu.memory_space<vmem>>, vector<2x64xf32>
    %7 = vector.extract_strided_slice %6 {offsets = [0, 0], sizes = [1, 64], strides = [1, 1]} : vector<2x64xf32> to vector<1x64xf32>
    %8 = vector.extract_strided_slice %6 {offsets = [1, 0], sizes = [1, 64], strides = [1, 1]} : vector<2x64xf32> to vector<1x64xf32>
    %cst_7 = arith.constant dense<0.000000e+00> : vector<2xf32>
    %9 = vector.multi_reduction <add>, %5, %cst_7 [1] : vector<2x64xf32> to vector<2xf32>
    %10 = vector.shape_cast %9 : vector<2xf32> to vector<2x1xf32>
    %cst_8 = arith.constant 6.400000e+01 : f32
    %11 = vector.broadcast %cst_8 : f32 to vector<2x1xf32>
    %12 = arith.divf %10, %11 : vector<2x1xf32>
    %13 = vector.broadcast %12 : vector<2x1xf32> to vector<2x64xf32>
    %14 = arith.subf %5, %13 : vector<2x64xf32>
    %15 = arith.mulf %14, %14 : vector<2x64xf32>
    %cst_9 = arith.constant dense<0.000000e+00> : vector<2xf32>
    %16 = vector.multi_reduction <add>, %15, %cst_9 [1] : vector<2x64xf32> to vector<2xf32>
    %17 = vector.shape_cast %16 : vector<2xf32> to vector<2x1xf32>
    %cst_10 = arith.constant 6.400000e+01 : f32
    %18 = vector.broadcast %cst_10 : f32 to vector<2x1xf32>
    %19 = arith.divf %17, %18 : vector<2x1xf32>
    %20 = vector.broadcast %12 : vector<2x1xf32> to vector<2x64xf32>
    %21 = arith.subf %5, %20 : vector<2x64xf32>
    %cst_11 = arith.constant 9.99999974E-6 : f32
    %22 = vector.broadcast %cst_11 : f32 to vector<2x1xf32>
    %23 = arith.addf %19, %22 : vector<2x1xf32>
    %24 = math.rsqrt %23 : vector<2x1xf32>
    %25 = vector.broadcast %24 : vector<2x1xf32> to vector<2x64xf32>
    %26 = arith.mulf %21, %25 : vector<2x64xf32>
    %27 = vector.broadcast %7 : vector<1x64xf32> to vector<2x64xf32>
    %28 = arith.mulf %26, %27 : vector<2x64xf32>
    %29 = vector.broadcast %8 : vector<1x64xf32> to vector<2x64xf32>
    %30 = arith.addf %28, %29 : vector<2x64xf32>
    %cst_12 = arith.constant 5.000000e-01 : f32
    %31 = vector.broadcast %cst_12 : f32 to vector<2x64xf32>
    %32 = arith.mulf %31, %30 : vector<2x64xf32>
    %cst_13 = arith.constant 4.471500e-02 : f32
    %33 = vector.broadcast %cst_13 : f32 to vector<2x64xf32>
    %34 = arith.mulf %33, %30 : vector<2x64xf32>
    %35 = arith.mulf %34, %30 : vector<2x64xf32>
    %36 = arith.mulf %35, %30 : vector<2x64xf32>
    %37 = arith.addf %30, %36 : vector<2x64xf32>
    %cst_14 = arith.constant 0.797884583 : f32
    %38 = vector.broadcast %cst_14 : f32 to vector<2x64xf32>
    %39 = arith.mulf %38, %37 : vector<2x64xf32>
    %40 = math.tanh %39 : vector<2x64xf32>
    %cst_15 = arith.constant 1.000000e+00 : f32
    %41 = vector.broadcast %cst_15 : f32 to vector<2x64xf32>
    %42 = arith.addf %41, %40 : vector<2x64xf32>
    %43 = arith.mulf %32, %42 : vector<2x64xf32>
    %c0_16 = arith.constant 0 : index
    %c0_17 = arith.constant 0 : index
    %44 = vector.load %arg5[%c0_16, %c0_17] : memref<64x1xf32, #tpu.memory_space<vmem>>, vector<64x1xf32>
    %cst_18 = arith.constant dense<0.000000e+00> : vector<2x1xf32>
    %45 = tpu.matmul %43, %44, %cst_18 {dimension_numbers = #tpu.dot_dimension_numbers<[1], [0], [0], [1], [0, 0, 1, 1], [], []>} : vector<2x64xf32>, vector<64x1xf32>, vector<2x1xf32> -> vector<2x1xf32>
    %c0_19 = arith.constant 0 : index
    %c0_20 = arith.constant 0 : index
    %46 = vector.load %arg6[%c0_19, %c0_20] : memref<1x1xf32, #tpu.memory_space<vmem>>, vector<1x1xf32>
    %47 = vector.broadcast %46 : vector<1x1xf32> to vector<2x1xf32>
    %48 = arith.addf %45, %47 : vector<2x1xf32>
    %c0_21 = arith.constant 0 : index
    %c0_22 = arith.constant 0 : index
    %49 = vector.load %arg7[%c0_21, %c0_22] : memref<2x1xf32, #tpu.memory_space<vmem>>, vector<2x1xf32>
    tpu.vector_store %arg7[%c0_21, %c0_22], %48 {strides = array<i32>} : memref<2x1xf32, #tpu.memory_space<vmem>>, vector<2x1xf32>,
    return
  }
  func.func @transform_0(%arg0: i32) -> (i32, i32) {
    %c0_i32 = arith.constant 0 : i32
    %c0_i32_0 = arith.constant 0 : i32
    %c0_i32_1 = arith.constant 0 : i32
    return %c0_i32, %c0_i32_0 : i32, i32
  }
  func.func @transform_1(%arg0: i32) -> (i32, i32) {
    %c0_i32 = arith.constant 0 : i32
    %c0_i32_0 = arith.constant 0 : i32
    %c0_i32_1 = arith.constant 0 : i32
    return %c0_i32, %c0_i32_0 : i32, i32
  }
  func.func @transform_2(%arg0: i32) -> (i32, i32) {
    %c0_i32 = arith.constant 0 : i32
    %c0_i32_0 = arith.constant 0 : i32
    %c0_i32_1 = arith.constant 0 : i32
    return %c0_i32, %c0_i32_0 : i32, i32
  }
  func.func @transform_3(%arg0: i32) -> (i32, i32) {
    %c0_i32 = arith.constant 0 : i32
    %c0_i32_0 = arith.constant 0 : i32
    %c0_i32_1 = arith.constant 0 : i32
    return %c0_i32, %c0_i32_0 : i32, i32
  }
  func.func @transform_4(%arg0: i32) -> (i32, i32) {
    %c0_i32 = arith.constant 0 : i32
    %c0_i32_0 = arith.constant 0 : i32
    %c0_i32_1 = arith.constant 0 : i32
    return %c0_i32, %c0_i32_0 : i32, i32
  }
  func.func @transform_5(%arg0: i32) -> (i32, i32) {
    %c0_i32 = arith.constant 0 : i32
    %c0_i32_0 = arith.constant 0 : i32
    %c0_i32_1 = arith.constant 0 : i32
    return %c0_i32, %c0_i32_0 : i32, i32
  }
  func.func @transform_6(%arg0: i32) -> (i32, i32) {
    %c0_i32 = arith.constant 0 : i32
    %c0_i32_0 = arith.constant 0 : i32
    %c0_i32_1 = arith.constant 0 : i32
    return %c0_i32, %c0_i32_0 : i32, i32
  }
}

</mosaic_0001>

<llo_original>
// kernel: qat_forward.5
$region0: #{qat_forward.5}
  #allocation0 [shape = 'u32[]', space=smem, size = 0x4, offset = 0x4, fixed_abs, tag = 'smem constant byte address 0x4 - core index']
  #allocation1 [shape = 'u32[144,128]{1,0:T(1,128)}', space=vmem, size = 0x12000, scoped, tag = 'internal scratch']
  %s0 = inlined_call_operand.vmem [shape: f32[16,32], index: 0, kind: input, shape index: {}]
  %s1 = inlined_call_operand.vmem [shape: f32[32,64], index: 1, kind: input, shape index: {}]
  %s2 = inlined_call_operand.vmem [shape: f32[1,64], index: 2, kind: input, shape index: {}]
  %s3 = inlined_call_operand.vmem [shape: f32[16,64], index: 3, kind: output, shape index: {}]
  %s4 = sld [smem:[#allocation0]]
  $region22: #{qat_forward.5} parent=0
    _
  %s6 = ssub.s32 1, %s4
  %s7 = scalar_select 0, %s6, %s4
  // Predicated region
  $region2: #{qat_forward.5} parent=0 // pred_check
    _
  $region3: #{qat_forward.5} parent=0 // pred_check_branch
    %9 = sbr.rel (0) target = $region5
  $region4: #{qat_forward.5} parent=0 // pred_region
    _
  $region5: #{qat_forward.5} parent=0 // pred_fallthru
    _
  // Predicated region
  $region6: #{qat_forward.5} parent=0 // pred_check
    _
  $region7: #{qat_forward.5} parent=0 // pred_check_branch
    %11 = sbr.rel (0) target = $region9
  $region8: #{qat_forward.5} parent=0 // pred_region
    _
  $region9: #{qat_forward.5} parent=0 // pred_fallthru
    _
  // Predicated region
  $region10: #{qat_forward.5} parent=0 // pred_check
    _
  $region11: #{qat_forward.5} parent=0 // pred_check_branch
    %13 = sbr.rel (0) target = $region13
  $region12: #{qat_forward.5} parent=0 // pred_region
    _
  $region13: #{qat_forward.5} parent=0 // pred_fallthru
    _
  %v14 = vld [vmem:[%s0] sm:$0xff]
  %v15 = vld [vmem:[%s0 + $0x8] sm:$0xff]
  %v16 = vld [vmem:[%s1] sm:$0xff]
  %v17 = vld [vmem:[%s1 + $0x8] sm:$0xff]
  %v18 = vld [vmem:[%s1 + $0x10] sm:$0xff]
  %v19 = vld [vmem:[%s1 + $0x18] sm:$0xff]
  %v20 = vld [vmem:[%s2] sm:$0x1]
  %v22 = vlaneseq
  %v23 = vshrl.u32 %v22, 7
  %v24 = vsub.s32 0, %v23
  %v25 = vrot.slane %v20, %v24
  %vm27 = vcmask 261120
  %v29 = vsel %vm27, %v14, 0
  %v32 = vsel %vm27, %v15, 0
  %34 = vmatprep.subr.mxu0 0.0
  %35 = vmatpush1.msra.mxu0 %v16
  %36 = vmatprep.subr.mxu0 0.0
  %37 = vmatpush1.msra.mxu0 %v17
  %38 = vmatprep.subr.mxu0 0.0
  %39 = vmatpush1.msra.mxu0 %v18
  %40 = vmatprep.subr.mxu0 0.0
  %41 = vmatpush1.msra.mxu0 %v19
  %42 = vmatprep.subr.mxu0 0.0
  %43 = vmatpush1.msra.mxu0 0.0
  %44 = vmatprep.subr.mxu0 0.0
  %45 = vmatpush1.msra.mxu0 0.0
  %46 = vmatprep.subr.mxu0 0.0
  %47 = vmatpush1.msra.mxu0 0.0
  %48 = vmatprep.subr.mxu0 0.0
  %49 = vmatpush1.msra.mxu0 0.0
  %50 = vmatprep.subr.mxu0 0.0
  %51 = vmatpush1.msra.mxu0 0.0
  %52 = vmatprep.subr.mxu0 0.0
  %53 = vmatpush1.msra.mxu0 0.0
  %54 = vmatprep.subr.mxu0 0.0
  %55 = vmatpush1.msra.mxu0 0.0
  %56 = vmatprep.subr.mxu0 0.0
  %57 = vmatpush1.msra.mxu0 0.0
  %58 = vmatprep.subr.mxu0 0.0
  %59 = vmatpush1.msra.mxu0 0.0
  %60 = vmatprep.subr.mxu0 0.0
  %61 = vmatpush1.msra.mxu0 0.0
  %62 = vmatprep.subr.mxu0 0.0
  %63 = vmatpush1.msra.mxu0 0.0
  %64 = vmatprep.subr.mxu0 0.0
  %65 = vmatpush1.msra.mxu0 0.0
  %66 = vmatprep.subr.mxu0 0.0
  %67 = vmatpush1.msra.mxu0 0.0
  %68 = vmatprep.subr.mxu0 0.0
  %69 = vmatpush1.msra.mxu0 0.0
  %70 = vmatprep.subr.mxu0 0.0
  %71 = vmatpush1.msra.mxu0 0.0
  %72 = vmatprep.subr.mxu0 0.0
  %73 = vmatpush1.msra.mxu0 0.0
  %74 = vmatprep.subr.mxu0 0.0
  %75 = vmatpush1.msra.mxu0 0.0
  %76 = vmatprep.subr.mxu0 0.0
  %77 = vmatpush1.msra.mxu0 0.0
  %78 = vmatprep.subr.mxu0 0.0
  %79 = vmatpush1.msra.mxu0 0.0
  %80 = vmatprep.subr.mxu0 0.0
  %81 = vmatpush1.msra.mxu0 0.0
  %82 = vmatprep.subr.mxu0 0.0
  %83 = vmatpush1.msra.mxu0 0.0
  %84 = vmatprep.subr.mxu0 0.0
  %85 = vmatpush1.msra.mxu0 0.0
  %86 = vmatprep.subr.mxu0 0.0
  %87 = vmatpush1.msra.mxu0 0.0
  %88 = vmatprep.subr.mxu0 0.0
  %89 = vmatpush1.msra.mxu0 0.0
  %90 = vmatprep.subr.mxu0 0.0
  %91 = vmatpush1.msra.mxu0 0.0
  %92 = vmatprep.subr.mxu0 0.0
  %93 = vmatpush1.msra.mxu0 0.0
  %94 = vmatprep.subr.mxu0 0.0
  %95 = vmatpush1.msra.mxu0 0.0
  %96 = vmatprep.subr.mxu0 0.0
  %97 = vmatpush1.msra.mxu0 0.0
  %98 = vmatprep.mubr.f32.mxu0 0.0
  %99 = vmatmul.mubr.f32.gmra.mrb[0].mxu0 %v29
  %v100 = vpop.f32.mrb[0].mxu0
  %v101 = vadd.f32 %v25, %v100
  %v102 = vpop.f32.mrb[0].mxu0
  %103 = vmatprep.mubr.f32.mxu0 0.0
  %104 = vmatmul.mubr.f32.gmra.mrb[0].mxu0 %v32
  %v105 = vpop.f32.mrb[0].mxu0
  %v106 = vadd.f32 %v25, %v105
  %v107 = vpop.f32.mrb[0].mxu0
  %108 = vdwg.mxu0
  %vm109 = vcmask 523264
  %110 = vst.msk [vmem:[%s3] sm:$0xff] %vm109, %v101
  %111 = vst.msk [vmem:[%s3 + $0x8] sm:$0xff] %vm109, %v106
  // Predicated region
  $region14: #{qat_forward.5} parent=0 // pred_check
    _
  $region15: #{qat_forward.5} parent=0 // pred_check_branch
    %113 = sbr.rel (0) target = $region17
  $region16: #{qat_forward.5} parent=0 // pred_region
    _
  $region17: #{qat_forward.5} parent=0 // pred_fallthru
    _
  // Predicated region
  $region18: #{qat_forward.5} parent=0 // pred_check
    _
  $region19: #{qat_forward.5} parent=0 // pred_check_branch
    %115 = sbr.rel (0) target = $region21
  $region20: #{qat_forward.5} parent=0 // pred_region
    _
  $region21: #{qat_forward.5} parent=0 // pred_fallthru
    _

// kernel: qat_forward.4
$region0: #{qat_forward.4}
  #allocation0 [shape = 'u32[]', space=smem, size = 0x4, offset = 0x4, fixed_abs, tag = 'smem constant byte address 0x4 - core index']
  #allocation1 [shape = 'u32[144,128]{1,0:T(1,128)}', space=vmem, size = 0x12000, scoped, tag = 'internal scratch']
  %s0 = inlined_call_operand.vmem [shape: f32[14,13], index: 0, kind: input, shape index: {}]
  %s1 = inlined_call_operand.vmem [shape: f32[13,64], index: 1, kind: input, shape index: {}]
  %s2 = inlined_call_operand.vmem [shape: f32[1,64], index: 2, kind: input, shape index: {}]
  %s3 = inlined_call_operand.vmem [shape: f32[2,64], index: 3, kind: input, shape index: {}]
  %s4 = inlined_call_operand.vmem [shape: f32[64,64], index: 4, kind: input, shape index: {}]
  %s5 = inlined_call_operand.vmem [shape: f32[1,64], index: 5, kind: input, shape index: {}]
  %s6 = inlined_call_operand.vmem [shape: f32[14,64], index: 6, kind: output, shape index: {}]
  %s7 = sld [smem:[#allocation0]]
  $region34: #{qat_forward.4} parent=0
    _
  %s9 = ssub.s32 1, %s7
  %s10 = scalar_select 0, %s9, %s7
  // Predicated region
  $region2: #{qat_forward.4} parent=0 // pred_check
    _
  $region3: #{qat_forward.4} parent=0 // pred_check_branch
    %12 = sbr.rel (0) target = $region5
  $region4: #{qat_forward.4} parent=0 // pred_region
    _
  $region5: #{qat_forward.4} parent=0 // pred_fallthru
    _
  // Predicated region
  $region6: #{qat_forward.4} parent=0 // pred_check
    _
  $region7: #{qat_forward.4} parent=0 // pred_check_branch
    %14 = sbr.rel (0) target = $region9
  $region8: #{qat_forward.4} parent=0 // pred_region
    _
  $region9: #{qat_forward.4} parent=0 // pred_fallthru
    _
  // Predicated region
  $region10: #{qat_forward.4} parent=0 // pred_check
    _
  $region11: #{qat_forward.4} parent=0 // pred_check_branch
    %16 = sbr.rel (0) target = $region13
  $region12: #{qat_forward.4} parent=0 // pred_region
    _
  $region13: #{qat_forward.4} parent=0 // pred_fallthru
    _
  // Predicated region
  $region14: #{qat_forward.4} parent=0 // pred_check
    _
  $region15: #{qat_forward.4} parent=0 // pred_check_branch
    %18 = sbr.rel (0) target = $region17
  $region16: #{qat_forward.4} parent=0 // pred_region
    _
  $region17: #{qat_forward.4} parent=0 // pred_fallthru
    _
  // Predicated region
  $region18: #{qat_forward.4} parent=0 // pred_check
    _
  $region19: #{qat_forward.4} parent=0 // pred_check_branch
    %20 = sbr.rel (0) target = $region21
  $region20: #{qat_forward.4} parent=0 // pred_region
    _
  $region21: #{qat_forward.4} parent=0 // pred_fallthru
    _
  // Predicated region
  $region22: #{qat_forward.4} parent=0 // pred_check
    _
  $region23: #{qat_forward.4} parent=0 // pred_check_branch
    %22 = sbr.rel (0) target = $region25
  $region24: #{qat_forward.4} parent=0 // pred_region
    _
  $region25: #{qat_forward.4} parent=0 // pred_fallthru
    _
  %v23 = vld [vmem:[%s0] sm:$0xff]
  %v24 = vld [vmem:[%s0 + $0x8] sm:$0x3f]
  %v25 = vld [vmem:[%s1] sm:$0xff]
  %v26 = vld [vmem:[%s1 + $0x8] sm:$0x1f]
  %v27 = vld [vmem:[%s2] sm:$0x1]
  %v29 = vlaneseq
  %v30 = vshrl.u32 %v29, 7
  %v31 = vsub.s32 0, %v30
  %v32 = vrot.slane %v27, %v31
  %vm34 = vcmask 105472
  %v36 = vsel %vm34, %v23, 0
  %v39 = vsel %vm34, %v24, 0
  %vm41 = vcmask 1044480
  %v43 = vsel %vm41, %v26, 0
  %45 = vmatprep.subr.mxu0 0.0
  %46 = vmatpush1.msra.mxu0 %v25
  %47 = vmatprep.subr.mxu0 0.0
  %48 = vmatpush1.msra.mxu0 %v43
  %49 = vmatprep.subr.mxu0 0.0
  %50 = vmatpush1.msra.mxu0 0.0
  %51 = vmatprep.subr.mxu0 0.0
  %52 = vmatpush1.msra.mxu0 0.0
  %53 = vmatprep.subr.mxu0 0.0
  %54 = vmatpush1.msra.mxu0 0.0
  %55 = vmatprep.subr.mxu0 0.0
  %56 = vmatpush1.msra.mxu0 0.0
  %57 = vmatprep.subr.mxu0 0.0
  %58 = vmatpush1.msra.mxu0 0.0
  %59 = vmatprep.subr.mxu0 0.0
  %60 = vmatpush1.msra.mxu0 0.0
  %61 = vmatprep.subr.mxu0 0.0
  %62 = vmatpush1.msra.mxu0 0.0
  %63 = vmatprep.subr.mxu0 0.0
  %64 = vmatpush1.msra.mxu0 0.0
  %65 = vmatprep.subr.mxu0 0.0
  %66 = vmatpush1.msra.mxu0 0.0
  %67 = vmatprep.subr.mxu0 0.0
  %68 = vmatpush1.msra.mxu0 0.0
  %69 = vmatprep.subr.mxu0 0.0
  %70 = vmatpush1.msra.mxu0 0.0
  %71 = vmatprep.subr.mxu0 0.0
  %72 = vmatpush1.msra.mxu0 0.0
  %73 = vmatprep.subr.mxu0 0.0
  %74 = vmatpush1.msra.mxu0 0.0
  %75 = vmatprep.subr.mxu0 0.0
  %76 = vmatpush1.msra.mxu0 0.0
  %77 = vmatprep.subr.mxu0 0.0
  %78 = vmatpush1.msra.mxu0 0.0
  %79 = vmatprep.subr.mxu0 0.0
  %80 = vmatpush1.msra.mxu0 0.0
  %81 = vmatprep.subr.mxu0 0.0
  %82 = vmatpush1.msra.mxu0 0.0
  %83 = vmatprep.subr.mxu0 0.0
  %84 = vmatpush1.msra.mxu0 0.0
  %85 = vmatprep.subr.mxu0 0.0
  %86 = vmatpush1.msra.mxu0 0.0
  %87 = vmatprep.subr.mxu0 0.0
  %88 = vmatpush1.msra.mxu0 0.0
  %89 = vmatprep.subr.mxu0 0.0
  %90 = vmatpush1.msra.mxu0 0.0
  %91 = vmatprep.subr.mxu0 0.0
  %92 = vmatpush1.msra.mxu0 0.0
  %93 = vmatprep.subr.mxu0 0.0
  %94 = vmatpush1.msra.mxu0 0.0
  %95 = vmatprep.subr.mxu0 0.0
  %96 = vmatpush1.msra.mxu0 0.0
  %97 = vmatprep.subr.mxu0 0.0
  %98 = vmatpush1.msra.mxu0 0.0
  %99 = vmatprep.subr.mxu0 0.0
  %100 = vmatpush1.msra.mxu0 0.0
  %101 = vmatprep.subr.mxu0 0.0
  %102 = vmatpush1.msra.mxu0 0.0
  %103 = vmatprep.subr.mxu0 0.0
  %104 = vmatpush1.msra.mxu0 0.0
  %105 = vmatprep.subr.mxu0 0.0
  %106 = vmatpush1.msra.mxu0 0.0
  %107 = vmatprep.subr.mxu0 0.0
  %108 = vmatpush1.msra.mxu0 0.0
  %109 = vmatprep.mubr.f32.mxu0 0.0
  %110 = vmatmul.mubr.f32.gmra.mrb[0].mxu0 %v36
  %v111 = vpop.f32.mrb[0].mxu0
  %v112 = vadd.f32 %v32, %v111
  %v113 = vpop.f32.mrb[0].mxu0
  %114 = vmatprep.mubr.f32.mxu0 0.0
  %115 = vmatmul.mubr.f32.gmra.mrb[0].mxu0 %v39
  %v116 = vpop.f32.mrb[0].mxu0
  %v117 = vadd.f32 %v32, %v116
  %v118 = vpop.f32.mrb[0].mxu0
  %119 = vdwg.mxu0
  %v120 = vld [vmem:[%s3] sm:$0x3]
  %vm121 = vcmask 523264
  %v122 = vsel %vm121, %v112, 0.0
  %123 = vadd.xlane.f32.xlu0 %v122
  %v124 = vpop.xlane.xlu0 %123
  %vm125 = vcmask 521216
  %v126 = vsel %vm125, %v117, 0.0
  %127 = vadd.xlane.f32.xlu0 %v126
  %v128 = vpop.xlane.xlu0 %127
  %v129 = vrcp.pop 64.0
  %v130 = vmul.f32 %v124, %v129
  %v131 = vmul.f32 %v128, %v129
  %v132 = vsub.f32 %v112, %v130
  %v133 = vsub.f32 %v117, %v131
  %v134 = vmul.f32 %v132, %v132
  %v135 = vmul.f32 %v133, %v133
  %v136 = vsel %vm121, %v134, 0.0
  %137 = vadd.xlane.f32.xlu0 %v136
  %v138 = vpop.xlane.xlu0 %137
  %v139 = vsel %vm125, %v135, 0.0
  %140 = vadd.xlane.f32.xlu0 %v139
  %v141 = vpop.xlane.xlu0 %140
  %v142 = vmul.f32 %v138, %v129
  %v143 = vmul.f32 %v141, %v129
  %v144 = vadd.f32 %v142, 1e-05
  %v145 = vadd.f32 %v143, 1e-05
  %v146 = vrsqrt.pop %v144
  %v147 = vrsqrt.pop %v145
  %v148 = vmul.f32 %v132, %v146
  %v149 = vmul.f32 %v133, %v147
  %v150 = vlaneseq
  %v151 = vshrl.u32 %v150, 7
  %v152 = vsub.s32 0, %v151
  %v153 = vrot.slane %v120, %v152
  %v154 = vmul.f32 %v148, %v153
  %v155 = vmul.f32 %v149, %v153
  %v156 = vlaneseq
  %v157 = vshrl.u32 %v156, 7
  %v158 = vsub.s32 1, %v157
  %v159 = vrot.slane %v120, %v158
  %v160 = vadd.f32 %v154, %v159
  %v161 = vadd.f32 %v155, %v159
  %v162 = vmul.f32 %v160, 0.5
  %v163 = vmul.f32 %v161, 0.5
  %v164 = vmul.f32 %v160, 0.044715
  %v165 = vmul.f32 %v161, 0.044715
  %v166 = vmul.f32 %v164, %v160
  %v167 = vmul.f32 %v165, %v161
  %v168 = vmul.f32 %v166, %v160
  %v169 = vmul.f32 %v167, %v161
  %v170 = vadd.f32 %v160, %v168
  %v171 = vadd.f32 %v161, %v169
  %v172 = vmul.f32 %v170, 0.7978846
  %v173 = vmul.f32 %v171, 0.7978846
  %v174 = vtanh.pop %v172
  %v175 = vtanh.pop %v173
  %v176 = vadd.f32 %v174, 1.0
  %v177 = vadd.f32 %v175, 1.0
  %v178 = vmul.f32 %v162, %v176
  %v179 = vmul.f32 %v163, %v177
  %v180 = vld [vmem:[%s4] sm:$0xff]
  %v181 = vld [vmem:[%s4 + $0x8] sm:$0xff]
  %v182 = vld [vmem:[%s4 + $0x10] sm:$0xff]
  %v183 = vld [vmem:[%s4 + $0x18] sm:$0xff]
  %v184 = vld [vmem:[%s4 + $0x20] sm:$0xff]
  %v185 = vld [vmem:[%s4 + $0x28] sm:$0xff]
  %v186 = vld [vmem:[%s4 + $0x30] sm:$0xff]
  %v187 = vld [vmem:[%s4 + $0x38] sm:$0xff]
  %v188 = vld [vmem:[%s5] sm:$0x1]
  %v190 = vlaneseq
  %v191 = vshrl.u32 %v190, 7
  %v192 = vsub.s32 0, %v191
  %v193 = vrot.slane %v188, %v192
  %v196 = vsel %vm121, %v178, 0
  %v199 = vsel %vm121, %v179, 0
  %201 = vmatprep.subr.mxu0 0.0
  %202 = vmatpush1.msra.mxu0 %v180
  %203 = vmatprep.subr.mxu0 0.0
  %204 = vmatpush1.msra.mxu0 %v181
  %205 = vmatprep.subr.mxu0 0.0
  %206 = vmatpush1.msra.mxu0 %v182
  %207 = vmatprep.subr.mxu0 0.0
  %208 = vmatpush1.msra.mxu0 %v183
  %209 = vmatprep.subr.mxu0 0.0
  %210 = vmatpush1.msra.mxu0 %v184
  %211 = vmatprep.subr.mxu0 0.0
  %212 = vmatpush1.msra.mxu0 %v185
  %213 = vmatprep.subr.mxu0 0.0
  %214 = vmatpush1.msra.mxu0 %v186
  %215 = vmatprep.subr.mxu0 0.0
  %216 = vmatpush1.msra.mxu0 %v187
  %217 = vmatprep.subr.mxu0 0.0
  %218 = vmatpush1.msra.mxu0 0.0
  %219 = vmatprep.subr.mxu0 0.0
  %220 = vmatpush1.msra.mxu0 0.0
  %221 = vmatprep.subr.mxu0 0.0
  %222 = vmatpush1.msra.mxu0 0.0
  %223 = vmatprep.subr.mxu0 0.0
  %224 = vmatpush1.msra.mxu0 0.0
  %225 = vmatprep.subr.mxu0 0.0
  %226 = vmatpush1.msra.mxu0 0.0
  %227 = vmatprep.subr.mxu0 0.0
  %228 = vmatpush1.msra.mxu0 0.0
  %229 = vmatprep.subr.mxu0 0.0
  %230 = vmatpush1.msra.mxu0 0.0
  %231 = vmatprep.subr.mxu0 0.0
  %232 = vmatpush1.msra.mxu0 0.0
  %233 = vmatprep.subr.mxu0 0.0
  %234 = vmatpush1.msra.mxu0 0.0
  %235 = vmatprep.subr.mxu0 0.0
  %236 = vmatpush1.msra.mxu0 0.0
  %237 = vmatprep.subr.mxu0 0.0
  %238 = vmatpush1.msra.mxu0 0.0
  %239 = vmatprep.subr.mxu0 0.0
  %240 = vmatpush1.msra.mxu0 0.0
  %241 = vmatprep.subr.mxu0 0.0
  %242 = vmatpush1.msra.mxu0 0.0
  %243 = vmatprep.subr.mxu0 0.0
  %244 = vmatpush1.msra.mxu0 0.0
  %245 = vmatprep.subr.mxu0 0.0
  %246 = vmatpush1.msra.mxu0 0.0
  %247 = vmatprep.subr.mxu0 0.0
  %248 = vmatpush1.msra.mxu0 0.0
  %249 = vmatprep.subr.mxu0 0.0
  %250 = vmatpush1.msra.mxu0 0.0
  %251 = vmatprep.subr.mxu0 0.0
  %252 = vmatpush1.msra.mxu0 0.0
  %253 = vmatprep.subr.mxu0 0.0
  %254 = vmatpush1.msra.mxu0 0.0
  %255 = vmatprep.subr.mxu0 0.0
  %256 = vmatpush1.msra.mxu0 0.0
  %257 = vmatprep.subr.mxu0 0.0
  %258 = vmatpush1.msra.mxu0 0.0
  %259 = vmatprep.subr.mxu0 0.0
  %260 = vmatpush1.msra.mxu0 0.0
  %261 = vmatprep.subr.mxu0 0.0
  %262 = vmatpush1.msra.mxu0 0.0
  %263 = vmatprep.subr.mxu0 0.0
  %264 = vmatpush1.msra.mxu0 0.0
  %265 = vmatprep.mubr.f32.mxu0 0.0
  %266 = vmatmul.mubr.f32.gmra.mrb[0].mxu0 %v196
  %v267 = vpop.f32.mrb[0].mxu0
  %v268 = vadd.f32 %v193, %v267
  %v269 = vpop.f32.mrb[0].mxu0
  %270 = vmatprep.mubr.f32.mxu0 0.0
  %271 = vmatmul.mubr.f32.gmra.mrb[0].mxu0 %v199
  %v272 = vpop.f32.mrb[0].mxu0
  %v273 = vadd.f32 %v193, %v272
  %v274 = vpop.f32.mrb[0].mxu0
  %275 = vdwg.mxu0
  %276 = vst.msk [vmem:[%s6] sm:$0xff] %vm121, %v268
  %277 = vst.msk [vmem:[%s6 + $0x8] sm:$0x3f] %vm125, %v273
  // Predicated region
  $region26: #{qat_forward.4} parent=0 // pred_check
    _
  $region27: #{qat_forward.4} parent=0 // pred_check_branch
    %279 = sbr.rel (0) target = $region29
  $region28: #{qat_forward.4} parent=0 // pred_region
    _
  $region29: #{qat_forward.4} parent=0 // pred_fallthru
    _
  // Predicated region
  $region30: #{qat_forward.4} parent=0 // pred_check
    _
  $region31: #{qat_forward.4} parent=0 // pred_check_branch
    %281 = sbr.rel (0) target = $region33
  $region32: #{qat_forward.4} parent=0 // pred_region
    _
  $region33: #{qat_forward.4} parent=0 // pred_fallthru
    _

// kernel: qat_forward.7
$region0: #{qat_forward.7}
  #allocation0 [shape = 'u32[]', space=smem, size = 0x4, offset = 0x4, fixed_abs, tag = 'smem constant byte address 0x4 - core index']
  #allocation1 [shape = 'u32[144,128]{1,0:T(1,128)}', space=vmem, size = 0x12000, scoped, tag = 'internal scratch']
  #allocation2 [shape = 'f32[1,1]{1,0:T(1,128)S(1)}', space=vmem, size = 0x200, scoped, tag = 'scoped memory for qat_forward.7']
  %s0 = inlined_call_operand.vmem [shape: f32[2,64], index: 0, kind: input, shape index: {}]
  %s1 = inlined_call_operand.vmem [shape: f32[64,64], index: 1, kind: input, shape index: {}]
  %s2 = inlined_call_operand.vmem [shape: f32[1,64], index: 2, kind: input, shape index: {}]
  %s3 = inlined_call_operand.vmem [shape: f32[2,64], index: 3, kind: input, shape index: {}]
  %s4 = inlined_call_operand.vmem [shape: f32[64,1], index: 4, kind: input, shape index: {}]
  %s5 = inlined_call_operand.<no memory space> [shape: f32[1,1], index: 5, kind: input, shape index: {}]
  %s6 = inlined_call_operand.vmem [shape: f32[2,1], index: 6, kind: output, shape index: {}]
  %s7 = sld [smem:[#allocation0]]
  $region34: #{qat_forward.7} parent=0
    _
  %s9 = ssub.s32 1, %s7
  %s10 = scalar_select 0, %s9, %s7
  %v11 = vstv %s5
  %12 = vst [vmem:[#allocation2] sm:$0x1] %v11
  // Predicated region
  $region2: #{qat_forward.7} parent=0 // pred_check
    _
  $region3: #{qat_forward.7} parent=0 // pred_check_branch
    %14 = sbr.rel (0) target = $region5
  $region4: #{qat_forward.7} parent=0 // pred_region
    _
  $region5: #{qat_forward.7} parent=0 // pred_fallthru
    _
  // Predicated region
  $region6: #{qat_forward.7} parent=0 // pred_check
    _
  $region7: #{qat_forward.7} parent=0 // pred_check_branch
    %16 = sbr.rel (0) target = $region9
  $region8: #{qat_forward.7} parent=0 // pred_region
    _
  $region9: #{qat_forward.7} parent=0 // pred_fallthru
    _
  // Predicated region
  $region10: #{qat_forward.7} parent=0 // pred_check
    _
  $region11: #{qat_forward.7} parent=0 // pred_check_branch
    %18 = sbr.rel (0) target = $region13
  $region12: #{qat_forward.7} parent=0 // pred_region
    _
  $region13: #{qat_forward.7} parent=0 // pred_fallthru
    _
  // Predicated region
  $region14: #{qat_forward.7} parent=0 // pred_check
    _
  $region15: #{qat_forward.7} parent=0 // pred_check_branch
    %20 = sbr.rel (0) target = $region17
  $region16: #{qat_forward.7} parent=0 // pred_region
    _
  $region17: #{qat_forward.7} parent=0 // pred_fallthru
    _
  // Predicated region
  $region18: #{qat_forward.7} parent=0 // pred_check
    _
  $region19: #{qat_forward.7} parent=0 // pred_check_branch
    %22 = sbr.rel (0) target = $region21
  $region20: #{qat_forward.7} parent=0 // pred_region
    _
  $region21: #{qat_forward.7} parent=0 // pred_fallthru
    _
  // Predicated region
  $region22: #{qat_forward.7} parent=0 // pred_check
    _
  $region23: #{qat_forward.7} parent=0 // pred_check_branch
    %24 = sbr.rel (0) target = $region25
  $region24: #{qat_forward.7} parent=0 // pred_region
    _
  $region25: #{qat_forward.7} parent=0 // pred_fallthru
    _
  %v25 = vld [vmem:[%s0] sm:$0x3]
  %v26 = vld [vmem:[%s1] sm:$0xff]
  %v27 = vld [vmem:[%s1 + $0x8] sm:$0xff]
  %v28 = vld [vmem:[%s1 + $0x10] sm:$0xff]
  %v29 = vld [vmem:[%s1 + $0x18] sm:$0xff]
  %v30 = vld [vmem:[%s1 + $0x20] sm:$0xff]
  %v31 = vld [vmem:[%s1 + $0x28] sm:$0xff]
  %v32 = vld [vmem:[%s1 + $0x30] sm:$0xff]
  %v33 = vld [vmem:[%s1 + $0x38] sm:$0xff]
  %v34 = vld [vmem:[%s2] sm:$0x1]
  %v36 = vlaneseq
  %v37 = vshrl.u32 %v36, 7
  %v38 = vsub.s32 0, %v37
  %v39 = vrot.slane %v34, %v38
  %vm41 = vcmask 523264
  %v43 = vsel %vm41, %v25, 0
  %45 = vmatprep.subr.mxu0 0.0
  %46 = vmatpush1.msra.mxu0 %v26
  %47 = vmatprep.subr.mxu0 0.0
  %48 = vmatpush1.msra.mxu0 %v27
  %49 = vmatprep.subr.mxu0 0.0
  %50 = vmatpush1.msra.mxu0 %v28
  %51 = vmatprep.subr.mxu0 0.0
  %52 = vmatpush1.msra.mxu0 %v29
  %53 = vmatprep.subr.mxu0 0.0
  %54 = vmatpush1.msra.mxu0 %v30
  %55 = vmatprep.subr.mxu0 0.0
  %56 = vmatpush1.msra.mxu0 %v31
  %57 = vmatprep.subr.mxu0 0.0
  %58 = vmatpush1.msra.mxu0 %v32
  %59 = vmatprep.subr.mxu0 0.0
  %60 = vmatpush1.msra.mxu0 %v33
  %61 = vmatprep.subr.mxu0 0.0
  %62 = vmatpush1.msra.mxu0 0.0
  %63 = vmatprep.subr.mxu0 0.0
  %64 = vmatpush1.msra.mxu0 0.0
  %65 = vmatprep.subr.mxu0 0.0
  %66 = vmatpush1.msra.mxu0 0.0
  %67 = vmatprep.subr.mxu0 0.0
  %68 = vmatpush1.msra.mxu0 0.0
  %69 = vmatprep.subr.mxu0 0.0
  %70 = vmatpush1.msra.mxu0 0.0
  %71 = vmatprep.subr.mxu0 0.0
  %72 = vmatpush1.msra.mxu0 0.0
  %73 = vmatprep.subr.mxu0 0.0
  %74 = vmatpush1.msra.mxu0 0.0
  %75 = vmatprep.subr.mxu0 0.0
  %76 = vmatpush1.msra.mxu0 0.0
  %77 = vmatprep.subr.mxu0 0.0
  %78 = vmatpush1.msra.mxu0 0.0
  %79 = vmatprep.subr.mxu0 0.0
  %80 = vmatpush1.msra.mxu0 0.0
  %81 = vmatprep.subr.mxu0 0.0
  %82 = vmatpush1.msra.mxu0 0.0
  %83 = vmatprep.subr.mxu0 0.0
  %84 = vmatpush1.msra.mxu0 0.0
  %85 = vmatprep.subr.mxu0 0.0
  %86 = vmatpush1.msra.mxu0 0.0
  %87 = vmatprep.subr.mxu0 0.0
  %88 = vmatpush1.msra.mxu0 0.0
  %89 = vmatprep.subr.mxu0 0.0
  %90 = vmatpush1.msra.mxu0 0.0
  %91 = vmatprep.subr.mxu0 0.0
  %92 = vmatpush1.msra.mxu0 0.0
  %93 = vmatprep.subr.mxu0 0.0
  %94 = vmatpush1.msra.mxu0 0.0
  %95 = vmatprep.subr.mxu0 0.0
  %96 = vmatpush1.msra.mxu0 0.0
  %97 = vmatprep.subr.mxu0 0.0
  %98 = vmatpush1.msra.mxu0 0.0
  %99 = vmatprep.subr.mxu0 0.0
  %100 = vmatpush1.msra.mxu0 0.0
  %101 = vmatprep.subr.mxu0 0.0
  %102 = vmatpush1.msra.mxu0 0.0
  %103 = vmatprep.subr.mxu0 0.0
  %104 = vmatpush1.msra.mxu0 0.0
  %105 = vmatprep.subr.mxu0 0.0
  %106 = vmatpush1.msra.mxu0 0.0
  %107 = vmatprep.subr.mxu0 0.0
  %108 = vmatpush1.msra.mxu0 0.0
  %109 = vmatprep.mubr.f32.mxu0 0.0
  %110 = vmatmul.mubr.f32.gmra.mrb[0].mxu0 %v43
  %v111 = vpop.f32.mrb[0].mxu0
  %v112 = vadd.f32 %v39, %v111
  %v113 = vpop.f32.mrb[0].mxu0
  %114 = vdwg.mxu0
  %v115 = vld [vmem:[%s3] sm:$0x3]
  %vm116 = vcmask 517120
  %v117 = vsel %vm116, %v112, 0.0
  %118 = vadd.xlane.f32.xlu0 %v117
  %v119 = vpop.xlane.xlu0 %118
  %v120 = vrcp.pop 64.0
  %v121 = vmul.f32 %v119, %v120
  %v122 = vsub.f32 %v112, %v121
  %v123 = vmul.f32 %v122, %v122
  %v124 = vsel %vm116, %v123, 0.0
  %125 = vadd.xlane.f32.xlu0 %v124
  %v126 = vpop.xlane.xlu0 %125
  %v127 = vmul.f32 %v126, %v120
  %v128 = vadd.f32 %v127, 1e-05
  %v129 = vrsqrt.pop %v128
  %v130 = vmul.f32 %v122, %v129
  %v131 = vlaneseq
  %v132 = vshrl.u32 %v131, 7
  %v133 = vsub.s32 0, %v132
  %v134 = vrot.slane %v115, %v133
  %v135 = vmul.f32 %v130, %v134
  %v136 = vlaneseq
  %v137 = vshrl.u32 %v136, 7
  %v138 = vsub.s32 1, %v137
  %v139 = vrot.slane %v115, %v138
  %v140 = vadd.f32 %v135, %v139
  %v141 = vmul.f32 %v140, 0.5
  %v142 = vmul.f32 %v140, 0.044715
  %v143 = vmul.f32 %v142, %v140
  %v144 = vmul.f32 %v143, %v140
  %v145 = vadd.f32 %v140, %v144
  %v146 = vmul.f32 %v145, 0.7978846
  %v147 = vtanh.pop %v146
  %v148 = vadd.f32 %v147, 1.0
  %v149 = vmul.f32 %v141, %v148
  %v150 = vld [vmem:[%s4] sm:$0xff]
  %v151 = vld [vmem:[%s4 + $0x8] sm:$0xff]
  %v152 = vld [vmem:[%s4 + $0x10] sm:$0xff]
  %v153 = vld [vmem:[%s4 + $0x18] sm:$0xff]
  %v154 = vld [vmem:[%s4 + $0x20] sm:$0xff]
  %v155 = vld [vmem:[%s4 + $0x28] sm:$0xff]
  %v156 = vld [vmem:[%s4 + $0x30] sm:$0xff]
  %v157 = vld [vmem:[%s4 + $0x38] sm:$0xff]
  %v158 = vld [vmem:[#allocation2] sm:$0x1]
  %v160 = vlaneseq
  %v161 = vshrl.u32 %v160, 7
  %v162 = vsub.s32 0, %v161
  %v163 = vrot.slane %v158, %v162
  %v166 = vsel %vm41, %v149, 0
  %168 = vmatprep.subr.mxu0 0.0
  %169 = vmatpush1.msra.mxu0 %v150
  %170 = vmatprep.subr.mxu0 0.0
  %171 = vmatpush1.msra.mxu0 %v151
  %172 = vmatprep.subr.mxu0 0.0
  %173 = vmatpush1.msra.mxu0 %v152
  %174 = vmatprep.subr.mxu0 0.0
  %175 = vmatpush1.msra.mxu0 %v153
  %176 = vmatprep.subr.mxu0 0.0
  %177 = vmatpush1.msra.mxu0 %v154
  %178 = vmatprep.subr.mxu0 0.0
  %179 = vmatpush1.msra.mxu0 %v155
  %180 = vmatprep.subr.mxu0 0.0
  %181 = vmatpush1.msra.mxu0 %v156
  %182 = vmatprep.subr.mxu0 0.0
  %183 = vmatpush1.msra.mxu0 %v157
  %184 = vmatprep.subr.mxu0 0.0
  %185 = vmatpush1.msra.mxu0 0.0
  %186 = vmatprep.subr.mxu0 0.0
  %187 = vmatpush1.msra.mxu0 0.0
  %188 = vmatprep.subr.mxu0 0.0
  %189 = vmatpush1.msra.mxu0 0.0
  %190 = vmatprep.subr.mxu0 0.0
  %191 = vmatpush1.msra.mxu0 0.0
  %192 = vmatprep.subr.mxu0 0.0
  %193 = vmatpush1.msra.mxu0 0.0
  %194 = vmatprep.subr.mxu0 0.0
  %195 = vmatpush1.msra.mxu0 0.0
  %196 = vmatprep.subr.mxu0 0.0
  %197 = vmatpush1.msra.mxu0 0.0
  %198 = vmatprep.subr.mxu0 0.0
  %199 = vmatpush1.msra.mxu0 0.0
  %200 = vmatprep.subr.mxu0 0.0
  %201 = vmatpush1.msra.mxu0 0.0
  %202 = vmatprep.subr.mxu0 0.0
  %203 = vmatpush1.msra.mxu0 0.0
  %204 = vmatprep.subr.mxu0 0.0
  %205 = vmatpush1.msra.mxu0 0.0
  %206 = vmatprep.subr.mxu0 0.0
  %207 = vmatpush1.msra.mxu0 0.0
  %208 = vmatprep.subr.mxu0 0.0
  %209 = vmatpush1.msra.mxu0 0.0
  %210 = vmatprep.subr.mxu0 0.0
  %211 = vmatpush1.msra.mxu0 0.0
  %212 = vmatprep.subr.mxu0 0.0
  %213 = vmatpush1.msra.mxu0 0.0
  %214 = vmatprep.subr.mxu0 0.0
  %215 = vmatpush1.msra.mxu0 0.0
  %216 = vmatprep.subr.mxu0 0.0
  %217 = vmatpush1.msra.mxu0 0.0
  %218 = vmatprep.subr.mxu0 0.0
  %219 = vmatpush1.msra.mxu0 0.0
  %220 = vmatprep.subr.mxu0 0.0
  %221 = vmatpush1.msra.mxu0 0.0
  %222 = vmatprep.subr.mxu0 0.0
  %223 = vmatpush1.msra.mxu0 0.0
  %224 = vmatprep.subr.mxu0 0.0
  %225 = vmatpush1.msra.mxu0 0.0
  %226 = vmatprep.subr.mxu0 0.0
  %227 = vmatpush1.msra.mxu0 0.0
  %228 = vmatprep.subr.mxu0 0.0
  %229 = vmatpush1.msra.mxu0 0.0
  %230 = vmatprep.subr.mxu0 0.0
  %231 = vmatpush1.msra.mxu0 0.0
  %232 = vmatprep.mubr.f32.mxu0 0.0
  %233 = vmatmul.mubr.f32.gmra.mrb[0].mxu0 %v166
  %v234 = vpop.f32.mrb[0].mxu0
  %v235 = vadd.f32 %v163, %v234
  %v236 = vpop.f32.mrb[0].mxu0
  %237 = vdwg.mxu0
  %vm238 = vcmask 1024
  %239 = vst.msk [vmem:[%s6] sm:$0x3] %vm238, %v235
  // Predicated region
  $region26: #{qat_forward.7} parent=0 // pred_check
    _
  $region27: #{qat_forward.7} parent=0 // pred_check_branch
    %241 = sbr.rel (0) target = $region29
  $region28: #{qat_forward.7} parent=0 // pred_region
    _
  $region29: #{qat_forward.7} parent=0 // pred_fallthru
    _
  // Predicated region
  $region30: #{qat_forward.7} parent=0 // pred_check
    _
  $region31: #{qat_forward.7} parent=0 // pred_check_branch
    %243 = sbr.rel (0) target = $region33
  $region32: #{qat_forward.7} parent=0 // pred_region
    _
  $region33: #{qat_forward.7} parent=0 // pred_fallthru
    _

// kernel: qat_forward.6
$region0: #{qat_forward.6}
  #allocation0 [shape = 'u32[]', space=smem, size = 0x4, offset = 0x4, fixed_abs, tag = 'smem constant byte address 0x4 - core index']
  #allocation1 [shape = 'u32[144,128]{1,0:T(1,128)}', space=vmem, size = 0x12000, scoped, tag = 'internal scratch']
  %s0 = inlined_call_operand.vmem [shape: f32[2,16,64], index: 0, kind: input, shape index: {}]
  %s1 = inlined_call_operand.vmem [shape: f32[16,64], index: 1, kind: input, shape index: {}]
  %s2 = inlined_call_operand.vmem [shape: f32[2,2,16,16], index: 2, kind: input, shape index: {}]
  %s3 = inlined_call_operand.vmem [shape: f32[2,64], index: 3, kind: input, shape index: {}]
  %s4 = inlined_call_operand.vmem [shape: f32[64,128], index: 4, kind: input, shape index: {}]
  %s5 = inlined_call_operand.vmem [shape: f32[1,128], index: 5, kind: input, shape index: {}]
  %s6 = inlined_call_operand.vmem [shape: f32[64,64], index: 6, kind: input, shape index: {}]
  %s7 = inlined_call_operand.vmem [shape: f32[1,64], index: 7, kind: input, shape index: {}]
  %s8 = inlined_call_operand.vmem [shape: f32[64,64], index: 8, kind: input, shape index: {}]
  %s9 = inlined_call_operand.vmem [shape: f32[1,64], index: 9, kind: input, shape index: {}]
  %s10 = inlined_call_operand.vmem [shape: f32[2,64], index: 10, kind: input, shape index: {}]
  %s11 = inlined_call_operand.vmem [shape: f32[64,128], index: 11, kind: input, shape index: {}]
  %s12 = inlined_call_operand.vmem [shape: f32[1,128], index: 12, kind: input, shape index: {}]
  %s13 = inlined_call_operand.vmem [shape: f32[128,64], index: 13, kind: input, shape index: {}]
  %s14 = inlined_call_operand.vmem [shape: f32[1,64], index: 14, kind: input, shape index: {}]
  %s15 = inlined_call_operand.vmem [shape: f32[2,16,64], index: 15, kind: output, shape index: {}]
  %s16 = sld [smem:[#allocation0]]
  $region93: #{qat_forward.6} parent=0
    _
  %s18 = ssub.s32 1, %s16
  %s19 = scalar_select 0, %s18, %s16
  loop: start=0, step=1, limit=4
  $region2: #{qat_forward.6} parent=0 // loop_pre_header
    _
  $region3: #{qat_forward.6} parent=0 // loop_header
    %s21 = sphi 0, %s25
    %p22 = scmp.ge.s32.totalorder %s21, 4
    %s31 = sphi 0, %s33
    %s34 = sphi 0, %s31
    %s35 = sphi 0, %s34
    %s51 = sphi 0, %s35
    %s55 = sphi 0, %s55
    %s57 = sphi 0, %s55
    %s58 = sphi 0, %s57
    %s72 = sphi 0, %s58
    %s78 = sphi 0, %s80
    %s81 = sphi 0, %s78
    %s82 = sphi 0, %s81
    %s98 = sphi 0, %s82
    %s102 = sphi 0, %s102
    %s104 = sphi 0, %s102
    %s105 = sphi 0, %s104
    %s119 = sphi 0, %s105
    %s123 = sphi 0, %s123
    %s125 = sphi 0, %s123
    %s126 = sphi 0, %s125
    %s140 = sphi 0, %s126
    %s144 = sphi 0, %s144
    %s146 = sphi 0, %s144
    %s147 = sphi 0, %s146
    %s161 = sphi 0, %s147
    %s165 = sphi 0, %s165
    %s167 = sphi 0, %s165
    %s168 = sphi 0, %s167
    %s182 = sphi 0, %s168
    %s186 = sphi 0, %s186
    %s188 = sphi 0, %s186
    %s189 = sphi 0, %s188
    %s203 = sphi 0, %s189
    %s207 = sphi 0, %s207
    %s209 = sphi 0, %s207
    %s210 = sphi 0, %s209
    %s224 = sphi 0, %s210
    %s228 = sphi 0, %s228
    %s230 = sphi 0, %s228
    %s231 = sphi 0, %s230
    %s245 = sphi 0, %s231
    %s249 = sphi 0, %s249
    %s251 = sphi 0, %s249
    %s252 = sphi 0, %s251
    %s266 = sphi 0, %s252
    %s270 = sphi 0, %s270
    %s272 = sphi 0, %s270
    %s273 = sphi 0, %s272
    %s287 = sphi 0, %s273
    %s291 = sphi 0, %s291
    %s293 = sphi 0, %s291
    %s294 = sphi 0, %s293
    %s308 = sphi 0, %s294
    %s312 = sphi 0, %s312
    %s314 = sphi 0, %s312
    %s315 = sphi 0, %s314
    %s329 = sphi 0, %s315
    %s333 = sphi 0, %s333
    %s335 = sphi 0, %s333
    %s336 = sphi 0, %s335
    %s350 = sphi 0, %s336
    %s356 = sphi 0, %s358
    %s359 = sphi 0, %s356
    %s360 = sphi 0, %s359
    %s376 = sphi 0, %s360
  $region4: #{qat_forward.6} parent=0 // loop_header_branch
    %24 = sbr.rel (%p22) target = $region8
  $region5: #{qat_forward.6} parent=0 // loop_body
    %s26 = ssub.s32 %s21, 1
    %s27 = ssub.s32 %s21, 2
    %s28 = sadd.s32 %s21, 1
    %s29 = ssub.s32 %s21, %s28
    %p30 = scmp.eq.s32.totalorder %s29, 0
    %s32 = sadd.s32 %s31, 1
    %s33 = scalar_select %p30, %s31, %s32
    %p36 = pneg %p30
    %p37 = scmp.eq.s32.totalorder %s21, 1
    %p38 = por %p36, %p37
    %p39 = scmp.ne.s32.totalorder %s31, %s34
    %p40 = scmp.eq.s32.totalorder %s21, 0
    %p41 = por %p39, %p40
    %p42 = scmp.ne.s32.totalorder %s31, %s34
    %p43 = scmp.eq.s32.totalorder %s26, 1
    %p44 = por %p42, %p43
    %p45 = scmp.ne.s32.totalorder %s34, %s35
    %p46 = scmp.eq.s32.totalorder %s26, 0
    %p47 = por %p45, %p46
    %p48 = scmp.ne.s32.totalorder %s34, %s35
    %p49 = scmp.eq.s32.totalorder %s27, 1
    %p50 = por %p48, %p49
    %p52 = scmp.ne.s32.totalorder %s35, %s51
    %p53 = scmp.eq.s32.totalorder %s27, 0
    %p54 = por %p52, %p53
    %s56 = sadd.s32 %s55, 1
    %p59 = scmp.eq.s32.totalorder %s21, 1
    %p60 = scmp.ne.s32.totalorder %s55, %s57
    %p61 = scmp.eq.s32.totalorder %s21, 0
    %p62 = por %p60, %p61
    %p63 = scmp.ne.s32.totalorder %s55, %s57
    %p64 = scmp.eq.s32.totalorder %s26, 1
    %p65 = por %p63, %p64
    %p66 = scmp.ne.s32.totalorder %s57, %s58
    %p67 = scmp.eq.s32.totalorder %s26, 0
    %p68 = por %p66, %p67
    %p69 = scmp.ne.s32.totalorder %s57, %s58
    %p70 = scmp.eq.s32.totalorder %s27, 1
    %p71 = por %p69, %p70
    %p73 = scmp.ne.s32.totalorder %s58, %s72
    %p74 = scmp.eq.s32.totalorder %s27, 0
    %p75 = por %p73, %p74
    %s76 = ssub.s32 %s21, %s28
    %p77 = scmp.eq.s32.totalorder %s76, 0
    %s79 = sadd.s32 %s78, 1
    %s80 = scalar_select %p77, %s78, %s79
    %p83 = pneg %p77
    %p84 = scmp.eq.s32.totalorder %s21, 1
    %p85 = por %p83, %p84
    %p86 = scmp.ne.s32.totalorder %s78, %s81
    %p87 = scmp.eq.s32.totalorder %s21, 0
    %p88 = por %p86, %p87
    %p89 = scmp.ne.s32.totalorder %s78, %s81
    %p90 = scmp.eq.s32.totalorder %s26, 1
    %p91 = por %p89, %p90
    %p92 = scmp.ne.s32.totalorder %s81, %s82
    %p93 = scmp.eq.s32.totalorder %s26, 0
    %p94 = por %p92, %p93
    %p95 = scmp.ne.s32.totalorder %s81, %s82
    %p96 = scmp.eq.s32.totalorder %s27, 1
    %p97 = por %p95, %p96
    %p99 = scmp.ne.s32.totalorder %s82, %s98
    %p100 = scmp.eq.s32.totalorder %s27, 0
    %p101 = por %p99, %p100
    %s103 = sadd.s32 %s102, 1
    %p106 = scmp.eq.s32.totalorder %s21, 1
    %p107 = scmp.ne.s32.totalorder %s102, %s104
    %p108 = scmp.eq.s32.totalorder %s21, 0
    %p109 = por %p107, %p108
    %p110 = scmp.ne.s32.totalorder %s102, %s104
    %p111 = scmp.eq.s32.totalorder %s26, 1
    %p112 = por %p110, %p111
    %p113 = scmp.ne.s32.totalorder %s104, %s105
    %p114 = scmp.eq.s32.totalorder %s26, 0
    %p115 = por %p113, %p114
    %p116 = scmp.ne.s32.totalorder %s104, %s105
    %p117 = scmp.eq.s32.totalorder %s27, 1
    %p118 = por %p116, %p117
    %p120 = scmp.ne.s32.totalorder %s105, %s119
    %p121 = scmp.eq.s32.totalorder %s27, 0
    %p122 = por %p120, %p121
    %s124 = sadd.s32 %s123, 1
    %p127 = scmp.eq.s32.totalorder %s21, 1
    %p128 = scmp.ne.s32.totalorder %s123, %s125
    %p129 = scmp.eq.s32.totalorder %s21, 0
    %p130 = por %p128, %p129
    %p131 = scmp.ne.s32.totalorder %s123, %s125
    %p132 = scmp.eq.s32.totalorder %s26, 1
    %p133 = por %p131, %p132
    %p134 = scmp.ne.s32.totalorder %s125, %s126
    %p135 = scmp.eq.s32.totalorder %s26, 0
    %p136 = por %p134, %p135
    %p137 = scmp.ne.s32.totalorder %s125, %s126
    %p138 = scmp.eq.s32.totalorder %s27, 1
    %p139 = por %p137, %p138
    %p141 = scmp.ne.s32.totalorder %s126, %s140
    %p142 = scmp.eq.s32.totalorder %s27, 0
    %p143 = por %p141, %p142
    %s145 = sadd.s32 %s144, 1
    %p148 = scmp.eq.s32.totalorder %s21, 1
    %p149 = scmp.ne.s32.totalorder %s144, %s146
    %p150 = scmp.eq.s32.totalorder %s21, 0
    %p151 = por %p149, %p150
    %p152 = scmp.ne.s32.totalorder %s144, %s146
    %p153 = scmp.eq.s32.totalorder %s26, 1
    %p154 = por %p152, %p153
    %p155 = scmp.ne.s32.totalorder %s146, %s147
    %p156 = scmp.eq.s32.totalorder %s26, 0
    %p157 = por %p155, %p156
    %p158 = scmp.ne.s32.totalorder %s146, %s147
    %p159 = scmp.eq.s32.totalorder %s27, 1
    %p160 = por %p158, %p159
    %p162 = scmp.ne.s32.totalorder %s147, %s161
    %p163 = scmp.eq.s32.totalorder %s27, 0
    %p164 = por %p162, %p163
    %s166 = sadd.s32 %s165, 1
    %p169 = scmp.eq.s32.totalorder %s21, 1
    %p170 = scmp.ne.s32.totalorder %s165, %s167
    %p171 = scmp.eq.s32.totalorder %s21, 0
    %p172 = por %p170, %p171
    %p173 = scmp.ne.s32.totalorder %s165, %s167
    %p174 = scmp.eq.s32.totalorder %s26, 1
    %p175 = por %p173, %p174
    %p176 = scmp.ne.s32.totalorder %s167, %s168
    %p177 = scmp.eq.s32.totalorder %s26, 0
    %p178 = por %p176, %p177
    %p179 = scmp.ne.s32.totalorder %s167, %s168
    %p180 = scmp.eq.s32.totalorder %s27, 1
    %p181 = por %p179, %p180
    %p183 = scmp.ne.s32.totalorder %s168, %s182
    %p184 = scmp.eq.s32.totalorder %s27, 0
    %p185 = por %p183, %p184
    %s187 = sadd.s32 %s186, 1
    %p190 = scmp.eq.s32.totalorder %s21, 1
    %p191 = scmp.ne.s32.totalorder %s186, %s188
    %p192 = scmp.eq.s32.totalorder %s21, 0
    %p193 = por %p191, %p192
    %p194 = scmp.ne.s32.totalorder %s186, %s188
    %p195 = scmp.eq.s32.totalorder %s26, 1
    %p196 = por %p194, %p195
    %p197 = scmp.ne.s32.totalorder %s188, %s189
    %p198 = scmp.eq.s32.totalorder %s26, 0
    %p199 = por %p197, %p198
    %p200 = scmp.ne.s32.totalorder %s188, %s189
    %p201 = scmp.eq.s32.totalorder %s27, 1
    %p202 = por %p200, %p201
    %p204 = scmp.ne.s32.totalorder %s189, %s203
    %p205 = scmp.eq.s32.totalorder %s27, 0
    %p206 = por %p204, %p205
    %s208 = sadd.s32 %s207, 1
    %p211 = scmp.eq.s32.totalorder %s21, 1
    %p212 = scmp.ne.s32.totalorder %s207, %s209
    %p213 = scmp.eq.s32.totalorder %s21, 0
    %p214 = por %p212, %p213
    %p215 = scmp.ne.s32.totalorder %s207, %s209
    %p216 = scmp.eq.s32.totalorder %s26, 1
    %p217 = por %p215, %p216
    %p218 = scmp.ne.s32.totalorder %s209, %s210
    %p219 = scmp.eq.s32.totalorder %s26, 0
    %p220 = por %p218, %p219
    %p221 = scmp.ne.s32.totalorder %s209, %s210
    %p222 = scmp.eq.s32.totalorder %s27, 1
    %p223 = por %p221, %p222
    %p225 = scmp.ne.s32.totalorder %s210, %s224
    %p226 = scmp.eq.s32.totalorder %s27, 0
    %p227 = por %p225, %p226
    %s229 = sadd.s32 %s228, 1
    %p232 = scmp.eq.s32.totalorder %s21, 1
    %p233 = scmp.ne.s32.totalorder %s228, %s230
    %p234 = scmp.eq.s32.totalorder %s21, 0
    %p235 = por %p233, %p234
    %p236 = scmp.ne.s32.totalorder %s228, %s230
    %p237 = scmp.eq.s32.totalorder %s26, 1
    %p238 = por %p236, %p237
    %p239 = scmp.ne.s32.totalorder %s230, %s231
    %p240 = scmp.eq.s32.totalorder %s26, 0
    %p241 = por %p239, %p240
    %p242 = scmp.ne.s32.totalorder %s230, %s231
    %p243 = scmp.eq.s32.totalorder %s27, 1
    %p244 = por %p242, %p243
    %p246 = scmp.ne.s32.totalorder %s231, %s245
    %p247 = scmp.eq.s32.totalorder %s27, 0
    %p248 = por %p246, %p247
    %s250 = sadd.s32 %s249, 1
    %p253 = scmp.eq.s32.totalorder %s21, 1
    %p254 = scmp.ne.s32.totalorder %s249, %s251
    %p255 = scmp.eq.s32.totalorder %s21, 0
    %p256 = por %p254, %p255
    %p257 = scmp.ne.s32.totalorder %s249, %s251
    %p258 = scmp.eq.s32.totalorder %s26, 1
    %p259 = por %p257, %p258
    %p260 = scmp.ne.s32.totalorder %s251, %s252
    %p261 = scmp.eq.s32.totalorder %s26, 0
    %p262 = por %p260, %p261
    %p263 = scmp.ne.s32.totalorder %s251, %s252
    %p264 = scmp.eq.s32.totalorder %s27, 1
    %p265 = por %p263, %p264
    %p267 = scmp.ne.s32.totalorder %s252, %s266
    %p268 = scmp.eq.s32.totalorder %s27, 0
    %p269 = por %p267, %p268
    %s271 = sadd.s32 %s270, 1
    %p274 = scmp.eq.s32.totalorder %s21, 1
    %p275 = scmp.ne.s32.totalorder %s270, %s272
    %p276 = scmp.eq.s32.totalorder %s21, 0
    %p277 = por %p275, %p276
    %p278 = scmp.ne.s32.totalorder %s270, %s272
    %p279 = scmp.eq.s32.totalorder %s26, 1
    %p280 = por %p278, %p279
    %p281 = scmp.ne.s32.totalorder %s272, %s273
    %p282 = scmp.eq.s32.totalorder %s26, 0
    %p283 = por %p281, %p282
    %p284 = scmp.ne.s32.totalorder %s272, %s273
    %p285 = scmp.eq.s32.totalorder %s27, 1
    %p286 = por %p284, %p285
    %p288 = scmp.ne.s32.totalorder %s273, %s287
    %p289 = scmp.eq.s32.totalorder %s27, 0
    %p290 = por %p288, %p289
    %s292 = sadd.s32 %s291, 1
    %p295 = scmp.eq.s32.totalorder %s21, 1
    %p296 = scmp.ne.s32.totalorder %s291, %s293
    %p297 = scmp.eq.s32.totalorder %s21, 0
    %p298 = por %p296, %p297
    %p299 = scmp.ne.s32.totalorder %s291, %s293
    %p300 = scmp.eq.s32.totalorder %s26, 1
    %p301 = por %p299, %p300
    %p302 = scmp.ne.s32.totalorder %s293, %s294
    %p303 = scmp.eq.s32.totalorder %s26, 0
    %p304 = por %p302, %p303
    %p305 = scmp.ne.s32.totalorder %s293, %s294
    %p306 = scmp.eq.s32.totalorder %s27, 1
    %p307 = por %p305, %p306
    %p309 = scmp.ne.s32.totalorder %s294, %s308
    %p310 = scmp.eq.s32.totalorder %s27, 0
    %p311 = por %p309, %p310
    %s313 = sadd.s32 %s312, 1
    %p316 = scmp.eq.s32.totalorder %s21, 1
    %p317 = scmp.ne.s32.totalorder %s312, %s314
    %p318 = scmp.eq.s32.totalorder %s21, 0
    %p319 = por %p317, %p318
    %p320 = scmp.ne.s32.totalorder %s312, %s314
    %p321 = scmp.eq.s32.totalorder %s26, 1
    %p322 = por %p320, %p321
    %p323 = scmp.ne.s32.totalorder %s314, %s315
    %p324 = scmp.eq.s32.totalorder %s26, 0
    %p325 = por %p323, %p324
    %p326 = scmp.ne.s32.totalorder %s314, %s315
    %p327 = scmp.eq.s32.totalorder %s27, 1
    %p328 = por %p326, %p327
    %p330 = scmp.ne.s32.totalorder %s315, %s329
    %p331 = scmp.eq.s32.totalorder %s27, 0
    %p332 = por %p330, %p331
    %s334 = sadd.s32 %s333, 1
    %p337 = scmp.eq.s32.totalorder %s21, 1
    %p338 = scmp.ne.s32.totalorder %s333, %s335
    %p339 = scmp.eq.s32.totalorder %s21, 0
    %p340 = por %p338, %p339
    %p341 = scmp.ne.s32.totalorder %s333, %s335
    %p342 = scmp.eq.s32.totalorder %s26, 1
    %p343 = por %p341, %p342
    %p344 = scmp.ne.s32.totalorder %s335, %s336
    %p345 = scmp.eq.s32.totalorder %s26, 0
    %p346 = por %p344, %p345
    %p347 = scmp.ne.s32.totalorder %s335, %s336
    %p348 = scmp.eq.s32.totalorder %s27, 1
    %p349 = por %p347, %p348
    %p351 = scmp.ne.s32.totalorder %s336, %s350
    %p352 = scmp.eq.s32.totalorder %s27, 0
    %p353 = por %p351, %p352
    %s354 = ssub.s32 %s21, %s28
    %p355 = scmp.eq.s32.totalorder %s354, 0
    %s357 = sadd.s32 %s356, 1
    %s358 = scalar_select %p355, %s356, %s357
    %p361 = pneg %p355
    %p362 = scmp.eq.s32.totalorder %s21, 1
    %p363 = por %p361, %p362
    %p364 = scmp.ne.s32.totalorder %s356, %s359
    %p365 = scmp.eq.s32.totalorder %s21, 0
    %p366 = por %p364, %p365
    %p367 = scmp.ne.s32.totalorder %s356, %s359
    %p368 = scmp.eq.s32.totalorder %s26, 1
    %p369 = por %p367, %p368
    %p370 = scmp.ne.s32.totalorder %s359, %s360
    %p371 = scmp.eq.s32.totalorder %s26, 0
    %p372 = por %p370, %p371
    %p373 = scmp.ne.s32.totalorder %s359, %s360
    %p374 = scmp.eq.s32.totalorder %s27, 1
    %p375 = por %p373, %p374
    %p377 = scmp.ne.s32.totalorder %s360, %s376
    %p378 = scmp.eq.s32.totalorder %s27, 0
    %p379 = por %p377, %p378
    %p380 = scmp.le.s32.totalorder 1, %s21
    %p381 = scmp.lt.s32.totalorder %s21, 3
    %p382 = pnand %p380, %p381
    %p383 = pneg %p382
    // Predicated region
    $region9: #{qat_forward.6} parent=5 // pred_check
      _
    $region10: #{qat_forward.6} parent=5 // pred_check_branch
      %385 = sbr.rel (%p382) target = $region12
    $region11: #{qat_forward.6} parent=5 // pred_region
      %s386 = ssub.s32 %s21, 1
      // Predicated region
      $region13: #{qat_forward.6} parent=11 // pred_check
        %p387 = pneg %p68
      $region14: #{qat_forward.6} parent=11 // pred_check_branch
        %389 = sbr.rel (%p387) target = $region16
      $region15: #{qat_forward.6} parent=11 // pred_region
        _
      $region16: #{qat_forward.6} parent=11 // pred_fallthru
        _
      // Predicated region
      $region17: #{qat_forward.6} parent=11 // pred_check
        %p390 = pneg %p115
      $region18: #{qat_forward.6} parent=11 // pred_check_branch
        %392 = sbr.rel (%p390) target = $region20
      $region19: #{qat_forward.6} parent=11 // pred_region
        _
      $region20: #{qat_forward.6} parent=11 // pred_fallthru
        _
      // Predicated region
      $region21: #{qat_forward.6} parent=11 // pred_check
        %p393 = pneg %p136
      $region22: #{qat_forward.6} parent=11 // pred_check_branch
        %395 = sbr.rel (%p393) target = $region24
      $region23: #{qat_forward.6} parent=11 // pred_region
        _
      $region24: #{qat_forward.6} parent=11 // pred_fallthru
        _
      // Predicated region
      $region25: #{qat_forward.6} parent=11 // pred_check
        %p396 = pneg %p157
      $region26: #{qat_forward.6} parent=11 // pred_check_branch
        %398 = sbr.rel (%p396) target = $region28
      $region27: #{qat_forward.6} parent=11 // pred_region
        _
      $region28: #{qat_forward.6} parent=11 // pred_fallthru
        _
      // Predicated region
      $region29: #{qat_forward.6} parent=11 // pred_check
        %p399 = pneg %p178
      $region30: #{qat_forward.6} parent=11 // pred_check_branch
        %401 = sbr.rel (%p399) target = $region32
      $region31: #{qat_forward.6} parent=11 // pred_region
        _
      $region32: #{qat_forward.6} parent=11 // pred_fallthru
        _
      // Predicated region
      $region33: #{qat_forward.6} parent=11 // pred_check
        %p402 = pneg %p199
      $region34: #{qat_forward.6} parent=11 // pred_check_branch
        %404 = sbr.rel (%p402) target = $region36
      $region35: #{qat_forward.6} parent=11 // pred_region
        _
      $region36: #{qat_forward.6} parent=11 // pred_fallthru
        _
      // Predicated region
      $region37: #{qat_forward.6} parent=11 // pred_check
        %p405 = pneg %p220
      $region38: #{qat_forward.6} parent=11 // pred_check_branch
        %407 = sbr.rel (%p405) target = $region40
      $region39: #{qat_forward.6} parent=11 // pred_region
        _
      $region40: #{qat_forward.6} parent=11 // pred_fallthru
        _
      // Predicated region
      $region41: #{qat_forward.6} parent=11 // pred_check
        %p408 = pneg %p241
      $region42: #{qat_forward.6} parent=11 // pred_check_branch
        %410 = sbr.rel (%p408) target = $region44
      $region43: #{qat_forward.6} parent=11 // pred_region
        _
      $region44: #{qat_forward.6} parent=11 // pred_fallthru
        _
      // Predicated region
      $region45: #{qat_forward.6} parent=11 // pred_check
        %p411 = pneg %p262
      $region46: #{qat_forward.6} parent=11 // pred_check_branch
        %413 = sbr.rel (%p411) target = $region48
      $region47: #{qat_forward.6} parent=11 // pred_region
        _
      $region48: #{qat_forward.6} parent=11 // pred_fallthru
        _
      // Predicated region
      $region49: #{qat_forward.6} parent=11 // pred_check
        %p414 = pneg %p283
      $region50: #{qat_forward.6} parent=11 // pred_check_branch
        %416 = sbr.rel (%p414) target = $region52
      $region51: #{qat_forward.6} parent=11 // pred_region
        _
      $region52: #{qat_forward.6} parent=11 // pred_fallthru
        _
      // Predicated region
      $region53: #{qat_forward.6} parent=11 // pred_check
        %p417 = pneg %p304
      $region54: #{qat_forward.6} parent=11 // pred_check_branch
        %419 = sbr.rel (%p417) target = $region56
      $region55: #{qat_forward.6} parent=11 // pred_region
        _
      $region56: #{qat_forward.6} parent=11 // pred_fallthru
        _
      // Predicated region
      $region57: #{qat_forward.6} parent=11 // pred_check
        %p420 = pneg %p325
      $region58: #{qat_forward.6} parent=11 // pred_check_branch
        %422 = sbr.rel (%p420) target = $region60
      $region59: #{qat_forward.6} parent=11 // pred_region
        _
      $region60: #{qat_forward.6} parent=11 // pred_fallthru
        _
      // Predicated region
      $region61: #{qat_forward.6} parent=11 // pred_check
        %p423 = pneg %p346
      $region62: #{qat_forward.6} parent=11 // pred_check_branch
        %425 = sbr.rel (%p423) target = $region64
      $region63: #{qat_forward.6} parent=11 // pred_region
        _
      $region64: #{qat_forward.6} parent=11 // pred_fallthru
        _
    $region12: #{qat_forward.6} parent=5 // pred_fallthru
      _
    %p426 = scmp.lt.s32.totalorder %s21, 2
    // Predicated region
    $region65: #{qat_forward.6} parent=5 // pred_check
      %p427 = pneg %p426
    $region66: #{qat_forward.6} parent=5 // pred_check_branch
      %429 = sbr.rel (%p427) target = $region68
    $region67: #{qat_forward.6} parent=5 // pred_region
      // Predicated region
      $region69: #{qat_forward.6} parent=67 // pred_check
        %p430 = pneg %p41
      $region70: #{qat_forward.6} parent=67 // pred_check_branch
        %432 = sbr.rel (%p430) target = $region72
      $region71: #{qat_forward.6} parent=67 // pred_region
        %p433 = scmp.lt.s32.totalorder %s21, 1
        %s434 = scalar_select %p433, %s21, 1
        %s435 = smul.addr %s434, 2
        %s436 = smul.addr %s435, 8
        %s437 = scalar_lea.vmem %s0, %s436
      $region72: #{qat_forward.6} parent=67 // pred_fallthru
        _
      // Predicated region
      $region73: #{qat_forward.6} parent=67 // pred_check
        %p438 = pneg %p88
      $region74: #{qat_forward.6} parent=67 // pred_check_branch
        %440 = sbr.rel (%p438) target = $region76
      $region75: #{qat_forward.6} parent=67 // pred_region
        %p441 = scmp.lt.s32.totalorder %s21, 1
        %s442 = scalar_select %p441, %s21, 1
        %s443 = smul.addr %s442, 4
        %s444 = smul.addr %s443, 8
        %s445 = scalar_lea.vmem %s2, %s444
      $region76: #{qat_forward.6} parent=67 // pred_fallthru
        _
    $region68: #{qat_forward.6} parent=5 // pred_fallthru
      _
    %p446 = scmp.le.s32.totalorder 1, %s21
    %p447 = scmp.lt.s32.totalorder %s21, 3
    %p448 = pnand %p446, %p447
    %p449 = pneg %p448
    // Predicated region
    $region77: #{qat_forward.6} parent=5 // pred_check
      _
    $region78: #{qat_forward.6} parent=5 // pred_check_branch
      %451 = sbr.rel (%p448) target = $region80
    $region79: #{qat_forward.6} parent=5 // pred_region
      %s452 = ssub.s32 %s21, 1
      %p453 = scmp.lt.s32.totalorder %s26, 1
      %s454 = scalar_select %p453, %s26, 1
      %s455 = smul.addr %s454, 2
      %s456 = smul.addr %s455, 8
      %s457 = scalar_lea.vmem %s0, %s456
      %p458 = pneg %p47
      %p459 = pneg %p44
      %p460 = pneg %p68
      %p461 = pneg %p65
      %p462 = scmp.lt.s32.totalorder %s26, 1
      %s463 = scalar_select %p462, %s26, 1
      %s464 = smul.addr %s463, 4
      %s465 = smul.addr %s464, 8
      %s466 = scalar_lea.vmem %s2, %s465
      %p467 = pneg %p94
      %p468 = pneg %p91
      %p469 = pneg %p115
      %p470 = pneg %p112
      %p471 = pneg %p136
      %p472 = pneg %p133
      %p473 = pneg %p157
      %p474 = pneg %p154
      %p475 = pneg %p178
      %p476 = pneg %p175
      %p477 = pneg %p199
      %p478 = pneg %p196
      %p479 = pneg %p220
      %p480 = pneg %p217
      %p481 = pneg %p241
      %p482 = pneg %p238
      %p483 = pneg %p262
      %p484 = pneg %p259
      %p485 = pneg %p283
      %p486 = pneg %p280
      %p487 = pneg %p304
      %p488 = pneg %p301
      %p489 = pneg %p325
      %p490 = pneg %p322
      %p491 = pneg %p346
      %p492 = pneg %p343
      %p493 = pneg %p372
      %p494 = pneg %p369
      %p495 = scmp.lt.s32.totalorder %s26, 1
      %s496 = scalar_select %p495, %s26, 1
      %s497 = smul.addr %s496, 2
      %s498 = smul.addr %s497, 8
      %s499 = scalar_lea.vmem %s15, %s498
      %p500 = scmp.lt.s32.totalorder %s26, 1
      %s501 = scalar_select %p500, %s26, 1
      %s502 = smul.addr %s501, 2
      %s503 = smul.addr %s502, 8
      %s504 = scalar_lea.vmem %s0, %s503
      %p505 = scmp.lt.s32.totalorder %s26, 1
      %s506 = scalar_select %p505, %s26, 1
      %s507 = smul.addr %s506, 4
      %s508 = smul.addr %s507, 8
      %s509 = scalar_lea.vmem %s2, %s508
      %p510 = scmp.lt.s32.totalorder %s26, 1
      %s511 = scalar_select %p510, %s26, 1
      %s512 = smul.addr %s511, 2
      %s513 = smul.addr %s512, 8
      %s514 = scalar_lea.vmem %s15, %s513
      %v516 = vld [vmem:[%s504] sm:$0xff]
      %v517 = vld [vmem:[%s504 + $0x8] sm:$0xff]
      %v518 = vld [vmem:[%s3] sm:$0x3]
      %vm519 = vcmask 523264
      %v520 = vsel %vm519, %v516, 0.0
      %521 = vadd.xlane.f32.xlu0 %v520
      %v522 = vpop.xlane.xlu0 %521
      %v523 = vsel %vm519, %v517, 0.0
      %524 = vadd.xlane.f32.xlu0 %v523
      %v525 = vpop.xlane.xlu0 %524
      %v526 = vrcp.pop 64.0
      %v527 = vmul.f32 %v522, %v526
      %v528 = vmul.f32 %v525, %v526
      %v529 = vsub.f32 %v516, %v527
      %v530 = vsub.f32 %v517, %v528
      %v531 = vmul.f32 %v529, %v529
      %v532 = vmul.f32 %v530, %v530
      %v533 = vsel %vm519, %v531, 0.0
      %534 = vadd.xlane.f32.xlu0 %v533
      %v535 = vpop.xlane.xlu0 %534
      %v536 = vsel %vm519, %v532, 0.0
      %537 = vadd.xlane.f32.xlu0 %v536
      %v538 = vpop.xlane.xlu0 %537
      %v539 = vmul.f32 %v535, %v526
      %v540 = vmul.f32 %v538, %v526
      %v541 = vadd.f32 %v539, 1e-05
      %v542 = vadd.f32 %v540, 1e-05
      %v543 = vrsqrt.pop %v541
      %v544 = vrsqrt.pop %v542
      %v545 = vmul.f32 %v529, %v543
      %v546 = vmul.f32 %v530, %v544
      %v547 = vlaneseq
      %v548 = vshrl.u32 %v547, 7
      %v549 = vsub.s32 0, %v548
      %v550 = vrot.slane %v518, %v549
      %v551 = vmul.f32 %v545, %v550
      %v552 = vmul.f32 %v546, %v550
      %v553 = vlaneseq
      %v554 = vshrl.u32 %v553, 7
      %v555 = vsub.s32 1, %v554
      %v556 = vrot.slane %v518, %v555
      %v557 = vadd.f32 %v551, %v556
      %v558 = vadd.f32 %v552, %v556
      %v559 = vld [vmem:[%s1] sm:$0xff]
      %v560 = vld [vmem:[%s1 + $0x8] sm:$0xff]
      %v561 = vadd.f32 %v557, %v559
      %v562 = vadd.f32 %v558, %v560
      %v563 = vld [vmem:[%s4] sm:$0xff]
      %v564 = vld [vmem:[%s4 + $0x8] sm:$0xff]
      %v565 = vld [vmem:[%s4 + $0x10] sm:$0xff]
      %v566 = vld [vmem:[%s4 + $0x18] sm:$0xff]
      %v567 = vld [vmem:[%s4 + $0x20] sm:$0xff]
      %v568 = vld [vmem:[%s4 + $0x28] sm:$0xff]
      %v569 = vld [vmem:[%s4 + $0x30] sm:$0xff]
      %v570 = vld [vmem:[%s4 + $0x38] sm:$0xff]
      %v571 = vpack.c.bf16 %v562, %v561
      %v572 = vpack.c.bf16 %v564, %v563
      %v573 = vpack.c.bf16 %v566, %v565
      %v574 = vpack.c.bf16 %v568, %v567
      %v575 = vpack.c.bf16 %v570, %v569
      %v576 = vld [vmem:[%s5] sm:$0x1]
      %v578 = vlaneseq
      %v579 = vshrl.u32 %v578, 7
      %v580 = vsub.s32 0, %v579
      %v581 = vrot.slane %v576, %v580
      %v584 = vsel %vm519, %v571, 0
      %586 = vmatprep.subr.bf16.mxu0 0
      %587 = vmatpush1.bf16.msra.mxu0 %v572
      %588 = vmatprep.subr.bf16.mxu0 0
      %589 = vmatpush1.bf16.msra.mxu0 %v573
      %590 = vmatprep.subr.bf16.mxu0 0
      %591 = vmatpush1.bf16.msra.mxu0 %v574
      %592 = vmatprep.subr.bf16.mxu0 0
      %593 = vmatpush1.bf16.msra.mxu0 %v575
      %594 = vmatprep.subr.bf16.mxu0 0
      %595 = vmatpush1.bf16.msra.mxu0 0
      %596 = vmatprep.subr.bf16.mxu0 0
      %597 = vmatpush1.bf16.msra.mxu0 0
      %598 = vmatprep.subr.bf16.mxu0 0
      %599 = vmatpush1.bf16.msra.mxu0 0
      %600 = vmatprep.subr.bf16.mxu0 0
      %601 = vmatpush1.bf16.msra.mxu0 0
      %602 = vmatprep.subr.bf16.mxu0 0
      %603 = vmatpush1.bf16.msra.mxu0 0
      %604 = vmatprep.subr.bf16.mxu0 0
      %605 = vmatpush1.bf16.msra.mxu0 0
      %606 = vmatprep.subr.bf16.mxu0 0
      %607 = vmatpush1.bf16.msra.mxu0 0
      %608 = vmatprep.subr.bf16.mxu0 0
      %609 = vmatpush1.bf16.msra.mxu0 0
      %610 = vmatprep.subr.bf16.mxu0 0
      %611 = vmatpush1.bf16.msra.mxu0 0
      %612 = vmatprep.subr.bf16.mxu0 0
      %613 = vmatpush1.bf16.msra.mxu0 0
      %614 = vmatprep.subr.bf16.mxu0 0
      %615 = vmatpush1.bf16.msra.mxu0 0
      %616 = vmatprep.subr.bf16.mxu0 0
      %617 = vmatpush1.bf16.msra.mxu0 0
      %618 = vmatprep.mubr.bf16.mxu0 0
      %619 = vmatmul.mubr.bf16.gmra.mrb[0].mxu0 %v584
      %v620 = vpop.f32.mrb[0].mxu0
      %v621 = vadd.f32 %v581, %v620
      %v622 = vpop.f32.mrb[0].mxu0
      %v623 = vpop.f32.mrb[0].mxu0
      %v624 = vadd.f32 %v581, %v623
      %v625 = vpop.f32.mrb[0].mxu0
      %626 = vdwg.mxu0
      %v627 = vld [vmem:[%s6] sm:$0xff]
      %v628 = vld [vmem:[%s6 + $0x8] sm:$0xff]
      %v629 = vld [vmem:[%s6 + $0x10] sm:$0xff]
      %v630 = vld [vmem:[%s6 + $0x18] sm:$0xff]
      %v631 = vld [vmem:[%s6 + $0x20] sm:$0xff]
      %v632 = vld [vmem:[%s6 + $0x28] sm:$0xff]
      %v633 = vld [vmem:[%s6 + $0x30] sm:$0xff]
      %v634 = vld [vmem:[%s6 + $0x38] sm:$0xff]
      %v635 = vpack.c.bf16 %v558, %v557
      %v636 = vpack.c.bf16 %v628, %v627
      %v637 = vpack.c.bf16 %v630, %v629
      %v638 = vpack.c.bf16 %v632, %v631
      %v639 = vpack.c.bf16 %v634, %v633
      %v640 = vld [vmem:[%s7] sm:$0x1]
      %v642 = vlaneseq
      %v643 = vshrl.u32 %v642, 7
      %v644 = vsub.s32 0, %v643
      %v645 = vrot.slane %v640, %v644
      %v648 = vsel %vm519, %v635, 0
      %650 = vmatprep.subr.bf16.mxu0 0
      %651 = vmatpush1.bf16.msra.mxu0 %v636
      %652 = vmatprep.subr.bf16.mxu0 0
      %653 = vmatpush1.bf16.msra.mxu0 %v637
      %654 = vmatprep.subr.bf16.mxu0 0
      %655 = vmatpush1.bf16.msra.mxu0 %v638
      %656 = vmatprep.subr.bf16.mxu0 0
      %657 = vmatpush1.bf16.msra.mxu0 %v639
      %658 = vmatprep.subr.bf16.mxu0 0
      %659 = vmatpush1.bf16.msra.mxu0 0
      %660 = vmatprep.subr.bf16.mxu0 0
      %661 = vmatpush1.bf16.msra.mxu0 0
      %662 = vmatprep.subr.bf16.mxu0 0
      %663 = vmatpush1.bf16.msra.mxu0 0
      %664 = vmatprep.subr.bf16.mxu0 0
      %665 = vmatpush1.bf16.msra.mxu0 0
      %666 = vmatprep.subr.bf16.mxu0 0
      %667 = vmatpush1.bf16.msra.mxu0 0
      %668 = vmatprep.subr.bf16.mxu0 0
      %669 = vmatpush1.bf16.msra.mxu0 0
      %670 = vmatprep.subr.bf16.mxu0 0
      %671 = vmatpush1.bf16.msra.mxu0 0
      %672 = vmatprep.subr.bf16.mxu0 0
      %673 = vmatpush1.bf16.msra.mxu0 0
      %674 = vmatprep.subr.bf16.mxu0 0
      %675 = vmatpush1.bf16.msra.mxu0 0
      %676 = vmatprep.subr.bf16.mxu0 0
      %677 = vmatpush1.bf16.msra.mxu0 0
      %678 = vmatprep.subr.bf16.mxu0 0
      %679 = vmatpush1.bf16.msra.mxu0 0
      %680 = vmatprep.subr.bf16.mxu0 0
      %681 = vmatpush1.bf16.msra.mxu0 0
      %682 = vmatprep.mubr.bf16.mxu0 0
      %683 = vmatmul.mubr.bf16.gmra.mrb[0].mxu0 %v648
      %v684 = vpop.f32.mrb[0].mxu0
      %v685 = vadd.f32 %v645, %v684
      %v686 = vpop.f32.mrb[0].mxu0
      %v687 = vpop.f32.mrb[0].mxu0
      %v688 = vadd.f32 %v645, %v687
      %v689 = vpop.f32.mrb[0].mxu0
      %690 = vdwg.mxu0
      %v691 = vpack.c.bf16 %v624, %v621
      %693 = vrot.lane.b32.xlu0 %v691, 64
      %v694 = vpop.permute.xlu0 %693
      %vm695 = vcmask 261120
      %v697 = vsel %vm695, %v691, 0
      %v700 = vsel %vm695, %v694, 0
      %702 = vmatprep.subr.bf16.mxu0 0
      %703 = vmatpush1.bf16.xpose.msra.mxu0 %v700
      %704 = vmatprep.subr.bf16.mxu0 0
      %705 = vmatpush1.bf16.xpose.msra.mxu0 0
      %706 = vmatprep.subr.bf16.mxu0 0
      %707 = vmatpush1.bf16.xpose.msra.mxu0 0
      %708 = vmatprep.subr.bf16.mxu0 0
      %709 = vmatpush1.bf16.xpose.msra.mxu0 0
      %710 = vmatprep.subr.bf16.mxu0 0
      %711 = vmatpush1.bf16.xpose.msra.mxu0 0
      %712 = vmatprep.subr.bf16.mxu0 0
      %713 = vmatpush1.bf16.xpose.msra.mxu0 0
      %714 = vmatprep.subr.bf16.mxu0 0
      %715 = vmatpush1.bf16.xpose.msra.mxu0 0
      %716 = vmatprep.subr.bf16.mxu0 0
      %717 = vmatpush1.bf16.xpose.msra.mxu0 0
      %718 = vmatprep.subr.bf16.mxu0 0
      %719 = vmatpush1.bf16.xpose.msra.mxu0 0
      %720 = vmatprep.subr.bf16.mxu0 0
      %721 = vmatpush1.bf16.xpose.msra.mxu0 0
      %722 = vmatprep.subr.bf16.mxu0 0
      %723 = vmatpush1.bf16.xpose.msra.mxu0 0
      %724 = vmatprep.subr.bf16.mxu0 0
      %725 = vmatpush1.bf16.xpose.msra.mxu0 0
      %726 = vmatprep.subr.bf16.mxu0 0
      %727 = vmatpush1.bf16.xpose.msra.mxu0 0
      %728 = vmatprep.subr.bf16.mxu0 0
      %729 = vmatpush1.bf16.xpose.msra.mxu0 0
      %730 = vmatprep.subr.bf16.mxu0 0
      %731 = vmatpush1.bf16.xpose.msra.mxu0 0
      %732 = vmatprep.subr.bf16.mxu0 0
      %733 = vmatpush1.bf16.xpose.msra.mxu0 0
      %734 = vmatprep.mubr.bf16.mxu0 0
      %735 = vmatmul.mubr.bf16.gmra.mrb[0].mxu0 %v697
      %v736 = vpop.f32.mrb[0].mxu0
      %v737 = vadd.f32 0.0, %v736
      %v738 = vpop.f32.mrb[0].mxu0
      %v739 = vpop.f32.mrb[0].mxu0
      %v740 = vadd.f32 0.0, %v739
      %v741 = vpop.f32.mrb[0].mxu0
      %742 = vdwg.mxu0
      %v743 = vmul.f32 %v737, 0.17677669
      %v744 = vmul.f32 %v740, 0.17677669
      %v745 = vld [vmem:[%s509] sm:$0xff]
      %v746 = vld [vmem:[%s509 + $0x8] sm:$0xff]
      %v747 = vadd.f32 %v743, %v745
      %v748 = vadd.f32 %v744, %v746
      %vm749 = vcmask 130048
      %v750 = vsel %vm749, %v747, -inf
      %751 = vmax.xlane.f32.xlu0 %v750
      %v752 = vpop.xlane.xlu0 %751
      %v753 = vsel %vm749, %v748, -inf
      %754 = vmax.xlane.f32.xlu0 %v753
      %v755 = vpop.xlane.xlu0 %754
      %v756 = vsub.f32 %v747, %v752
      %v757 = vsub.f32 %v748, %v755
      %v758 = vmul.f32 %v756, 1.442695
      %v759 = vpow.pop %v758
      %v760 = vmul.f32 %v757, 1.442695
      %v761 = vpow.pop %v760
      %v762 = vsel %vm749, %v759, 0.0
      %763 = vadd.xlane.f32.xlu0 %v762
      %v764 = vpop.xlane.xlu0 %763
      %v765 = vsel %vm749, %v761, 0.0
      %766 = vadd.xlane.f32.xlu0 %v765
      %v767 = vpop.xlane.xlu0 %766
      %v768 = vrcp.pop %v764
      %v769 = vrcp.pop %v767
      %v770 = vmul.f32 %v759, %v768
      %v771 = vmul.f32 %v761, %v769
      %v772 = vpack.c.bf16 %v771, %v770
      %v773 = vpack.c.bf16 %v688, %v685
      %v775 = vsel %vm749, %v772, 0
      %777 = vmatprep.subr.bf16.mxu0 0
      %778 = vmatpush1.bf16.msra.mxu0 %v773
      %779 = vmatprep.subr.bf16.mxu0 0
      %780 = vmatpush1.bf16.msra.mxu0 0
      %781 = vmatprep.subr.bf16.mxu0 0
      %782 = vmatpush1.bf16.msra.mxu0 0
      %783 = vmatprep.subr.bf16.mxu0 0
      %784 = vmatpush1.bf16.msra.mxu0 0
      %785 = vmatprep.subr.bf16.mxu0 0
      %786 = vmatpush1.bf16.msra.mxu0 0
      %787 = vmatprep.subr.bf16.mxu0 0
      %788 = vmatpush1.bf16.msra.mxu0 0
      %789 = vmatprep.subr.bf16.mxu0 0
      %790 = vmatpush1.bf16.msra.mxu0 0
      %791 = vmatprep.subr.bf16.mxu0 0
      %792 = vmatpush1.bf16.msra.mxu0 0
      %793 = vmatprep.subr.bf16.mxu0 0
      %794 = vmatpush1.bf16.msra.mxu0 0
      %795 = vmatprep.subr.bf16.mxu0 0
      %796 = vmatpush1.bf16.msra.mxu0 0
      %797 = vmatprep.subr.bf16.mxu0 0
      %798 = vmatpush1.bf16.msra.mxu0 0
      %799 = vmatprep.subr.bf16.mxu0 0
      %800 = vmatpush1.bf16.msra.mxu0 0
      %801 = vmatprep.subr.bf16.mxu0 0
      %802 = vmatpush1.bf16.msra.mxu0 0
      %803 = vmatprep.subr.bf16.mxu0 0
      %804 = vmatpush1.bf16.msra.mxu0 0
      %805 = vmatprep.subr.bf16.mxu0 0
      %806 = vmatpush1.bf16.msra.mxu0 0
      %807 = vmatprep.subr.bf16.mxu0 0
      %808 = vmatpush1.bf16.msra.mxu0 0
      %809 = vmatprep.mubr.bf16.mxu0 0
      %810 = vmatmul.mubr.bf16.gmra.mrb[0].mxu0 %v775
      %v811 = vpop.f32.mrb[0].mxu0
      %v812 = vadd.f32 0.0, %v811
      %v813 = vpop.f32.mrb[0].mxu0
      %v814 = vpop.f32.mrb[0].mxu0
      %v815 = vadd.f32 0.0, %v814
      %v816 = vpop.f32.mrb[0].mxu0
      %817 = vdwg.mxu0
      %818 = vrot.lane.b32.xlu0 %v691, 96
      %v819 = vpop.permute.xlu0 %818
      %820 = vrot.lane.b32.xlu0 %v691, 32
      %v821 = vpop.permute.xlu0 %820
      %v823 = vsel %vm695, %v819, 0
      %v826 = vsel %vm695, %v821, 0
      %828 = vmatprep.subr.bf16.mxu0 0
      %829 = vmatpush1.bf16.xpose.msra.mxu0 %v826
      %830 = vmatprep.subr.bf16.mxu0 0
      %831 = vmatpush1.bf16.xpose.msra.mxu0 0
      %832 = vmatprep.subr.bf16.mxu0 0
      %833 = vmatpush1.bf16.xpose.msra.mxu0 0
      %834 = vmatprep.subr.bf16.mxu0 0
      %835 = vmatpush1.bf16.xpose.msra.mxu0 0
      %836 = vmatprep.subr.bf16.mxu0 0
      %837 = vmatpush1.bf16.xpose.msra.mxu0 0
      %838 = vmatprep.subr.bf16.mxu0 0
      %839 = vmatpush1.bf16.xpose.msra.mxu0 0
      %840 = vmatprep.subr.bf16.mxu0 0
      %841 = vmatpush1.bf16.xpose.msra.mxu0 0
      %842 = vmatprep.subr.bf16.mxu0 0
      %843 = vmatpush1.bf16.xpose.msra.mxu0 0
      %844 = vmatprep.subr.bf16.mxu0 0
      %845 = vmatpush1.bf16.xpose.msra.mxu0 0
      %846 = vmatprep.subr.bf16.mxu0 0
      %847 = vmatpush1.bf16.xpose.msra.mxu0 0
      %848 = vmatprep.subr.bf16.mxu0 0
      %849 = vmatpush1.bf16.xpose.msra.mxu0 0
      %850 = vmatprep.subr.bf16.mxu0 0
      %851 = vmatpush1.bf16.xpose.msra.mxu0 0
      %852 = vmatprep.subr.bf16.mxu0 0
      %853 = vmatpush1.bf16.xpose.msra.mxu0 0
      %854 = vmatprep.subr.bf16.mxu0 0
      %855 = vmatpush1.bf16.xpose.msra.mxu0 0
      %856 = vmatprep.subr.bf16.mxu0 0
      %857 = vmatpush1.bf16.xpose.msra.mxu0 0
      %858 = vmatprep.subr.bf16.mxu0 0
      %859 = vmatpush1.bf16.xpose.msra.mxu0 0
      %860 = vmatprep.mubr.bf16.mxu0 0
      %861 = vmatmul.mubr.bf16.gmra.mrb[0].mxu0 %v823
      %v862 = vpop.f32.mrb[0].mxu0
      %v863 = vadd.f32 0.0, %v862
      %v864 = vpop.f32.mrb[0].mxu0
      %v865 = vpop.f32.mrb[0].mxu0
      %v866 = vadd.f32 0.0, %v865
      %v867 = vpop.f32.mrb[0].mxu0
      %868 = vdwg.mxu0
      %v869 = vmul.f32 %v863, 0.17677669
      %v870 = vmul.f32 %v866, 0.17677669
      %s871 = scalar_lea.vmem %s509, 16
      %v872 = vld [vmem:[%s871] sm:$0xff]
      %v873 = vld [vmem:[%s871 + $0x8] sm:$0xff]
      %v874 = vadd.f32 %v869, %v872
      %v875 = vadd.f32 %v870, %v873
      %v876 = vsel %vm749, %v874, -inf
      %877 = vmax.xlane.f32.xlu0 %v876
      %v878 = vpop.xlane.xlu0 %877
      %v879 = vsel %vm749, %v875, -inf
      %880 = vmax.xlane.f32.xlu0 %v879
      %v881 = vpop.xlane.xlu0 %880
      %v882 = vsub.f32 %v874, %v878
      %v883 = vsub.f32 %v875, %v881
      %v884 = vmul.f32 %v882, 1.442695
      %v885 = vpow.pop %v884
      %v886 = vmul.f32 %v883, 1.442695
      %v887 = vpow.pop %v886
      %v888 = vsel %vm749, %v885, 0.0
      %889 = vadd.xlane.f32.xlu0 %v888
      %v890 = vpop.xlane.xlu0 %889
      %v891 = vsel %vm749, %v887, 0.0
      %892 = vadd.xlane.f32.xlu0 %v891
      %v893 = vpop.xlane.xlu0 %892
      %v894 = vrcp.pop %v890
      %v895 = vrcp.pop %v893
      %v896 = vmul.f32 %v885, %v894
      %v897 = vmul.f32 %v887, %v895
      %v898 = vpack.c.bf16 %v897, %v896
      %900 = vrot.lane.b32.xlu0 %v773, 96
      %v901 = vpop.permute.xlu0 %900
      %v904 = vsel %vm749, %v898, 0
      %906 = vmatprep.subr.bf16.mxu0 0
      %907 = vmatpush1.bf16.msra.mxu0 %v901
      %908 = vmatprep.subr.bf16.mxu0 0
      %909 = vmatpush1.bf16.msra.mxu0 0
      %910 = vmatprep.subr.bf16.mxu0 0
      %911 = vmatpush1.bf16.msra.mxu0 0
      %912 = vmatprep.subr.bf16.mxu0 0
      %913 = vmatpush1.bf16.msra.mxu0 0
      %914 = vmatprep.subr.bf16.mxu0 0
      %915 = vmatpush1.bf16.msra.mxu0 0
      %916 = vmatprep.subr.bf16.mxu0 0
      %917 = vmatpush1.bf16.msra.mxu0 0
      %918 = vmatprep.subr.bf16.mxu0 0
      %919 = vmatpush1.bf16.msra.mxu0 0
      %920 = vmatprep.subr.bf16.mxu0 0
      %921 = vmatpush1.bf16.msra.mxu0 0
      %922 = vmatprep.subr.bf16.mxu0 0
      %923 = vmatpush1.bf16.msra.mxu0 0
      %924 = vmatprep.subr.bf16.mxu0 0
      %925 = vmatpush1.bf16.msra.mxu0 0
      %926 = vmatprep.subr.bf16.mxu0 0
      %927 = vmatpush1.bf16.msra.mxu0 0
      %928 = vmatprep.subr.bf16.mxu0 0
      %929 = vmatpush1.bf16.msra.mxu0 0
      %930 = vmatprep.subr.bf16.mxu0 0
      %931 = vmatpush1.bf16.msra.mxu0 0
      %932 = vmatprep.subr.bf16.mxu0 0
      %933 = vmatpush1.bf16.msra.mxu0 0
      %934 = vmatprep.subr.bf16.mxu0 0
      %935 = vmatpush1.bf16.msra.mxu0 0
      %936 = vmatprep.subr.bf16.mxu0 0
      %937 = vmatpush1.bf16.msra.mxu0 0
      %938 = vmatprep.mubr.bf16.mxu0 0
      %939 = vmatmul.mubr.bf16.gmra.mrb[0].mxu0 %v904
      %v940 = vpop.f32.mrb[0].mxu0
      %v941 = vadd.f32 0.0, %v940
      %v942 = vpop.f32.mrb[0].mxu0
      %v943 = vpop.f32.mrb[0].mxu0
      %v944 = vadd.f32 0.0, %v943
      %v945 = vpop.f32.mrb[0].mxu0
      %946 = vdwg.mxu0
      %949 = vrot.lane.b32.xlu0 %v941, 32
      %v950 = vpop.permute.xlu0 %949
      %951 = vrot.lane.b32.xlu0 %v944, 32
      %v952 = vpop.permute.xlu0 %951
      %v955 = vsel %vm695, %v812, %v950
      %v956 = vsel %vm695, %v815, %v952
      %v957 = vld [vmem:[%s8] sm:$0xff]
      %v958 = vld [vmem:[%s8 + $0x8] sm:$0xff]
      %v959 = vld [vmem:[%s8 + $0x10] sm:$0xff]
      %v960 = vld [vmem:[%s8 + $0x18] sm:$0xff]
      %v961 = vld [vmem:[%s8 + $0x20] sm:$0xff]
      %v962 = vld [vmem:[%s8 + $0x28] sm:$0xff]
      %v963 = vld [vmem:[%s8 + $0x30] sm:$0xff]
      %v964 = vld [vmem:[%s8 + $0x38] sm:$0xff]
      %v965 = vpack.c.bf16 %v956, %v955
      %v966 = vpack.c.bf16 %v958, %v957
      %v967 = vpack.c.bf16 %v960, %v959
      %v968 = vpack.c.bf16 %v962, %v961
      %v969 = vpack.c.bf16 %v964, %v963
      %v971 = vsel %vm519, %v965, 0
      %973 = vmatprep.subr.bf16.mxu0 0
      %974 = vmatpush1.bf16.msra.mxu0 %v966
      %975 = vmatprep.subr.bf16.mxu0 0
      %976 = vmatpush1.bf16.msra.mxu0 %v967
      %977 = vmatprep.subr.bf16.mxu0 0
      %978 = vmatpush1.bf16.msra.mxu0 %v968
      %979 = vmatprep.subr.bf16.mxu0 0
      %980 = vmatpush1.bf16.msra.mxu0 %v969
      %981 = vmatprep.subr.bf16.mxu0 0
      %982 = vmatpush1.bf16.msra.mxu0 0
      %983 = vmatprep.subr.bf16.mxu0 0
      %984 = vmatpush1.bf16.msra.mxu0 0
      %985 = vmatprep.subr.bf16.mxu0 0
      %986 = vmatpush1.bf16.msra.mxu0 0
      %987 = vmatprep.subr.bf16.mxu0 0
      %988 = vmatpush1.bf16.msra.mxu0 0
      %989 = vmatprep.subr.bf16.mxu0 0
      %990 = vmatpush1.bf16.msra.mxu0 0
      %991 = vmatprep.subr.bf16.mxu0 0
      %992 = vmatpush1.bf16.msra.mxu0 0
      %993 = vmatprep.subr.bf16.mxu0 0
      %994 = vmatpush1.bf16.msra.mxu0 0
      %995 = vmatprep.subr.bf16.mxu0 0
      %996 = vmatpush1.bf16.msra.mxu0 0
      %997 = vmatprep.subr.bf16.mxu0 0
      %998 = vmatpush1.bf16.msra.mxu0 0
      %999 = vmatprep.subr.bf16.mxu0 0
      %1000 = vmatpush1.bf16.msra.mxu0 0
      %1001 = vmatprep.subr.bf16.mxu0 0
      %1002 = vmatpush1.bf16.msra.mxu0 0
      %1003 = vmatprep.subr.bf16.mxu0 0
      %1004 = vmatpush1.bf16.msra.mxu0 0
      %1005 = vmatprep.mubr.bf16.mxu0 0
      %1006 = vmatmul.mubr.bf16.gmra.mrb[0].mxu0 %v971
      %v1007 = vpop.f32.mrb[0].mxu0
      %v1008 = vadd.f32 0.0, %v1007
      %v1009 = vpop.f32.mrb[0].mxu0
      %v1010 = vpop.f32.mrb[0].mxu0
      %v1011 = vadd.f32 0.0, %v1010
      %v1012 = vpop.f32.mrb[0].mxu0
      %1013 = vdwg.mxu0
      %v1014 = vadd.f32 %v516, %v1008
      %v1015 = vadd.f32 %v517, %v1011
      %v1016 = vld [vmem:[%s9] sm:$0x1]
      %v1018 = vlaneseq
      %v1019 = vshrl.u32 %v1018, 7
      %v1020 = vsub.s32 0, %v1019
      %v1021 = vrot.slane %v1016, %v1020
      %v1023 = vadd.f32 %v1014, %v1021
      %v1024 = vadd.f32 %v1015, %v1021
      %v1025 = vld [vmem:[%s10] sm:$0x3]
      %v1026 = vsel %vm519, %v1023, 0.0
      %1027 = vadd.xlane.f32.xlu0 %v1026
      %v1028 = vpop.xlane.xlu0 %1027
      %v1029 = vsel %vm519, %v1024, 0.0
      %1030 = vadd.xlane.f32.xlu0 %v1029
      %v1031 = vpop.xlane.xlu0 %1030
      %v1032 = vmul.f32 %v1028, %v526
      %v1033 = vmul.f32 %v1031, %v526
      %v1034 = vsub.f32 %v1023, %v1032
      %v1035 = vsub.f32 %v1024, %v1033
      %v1036 = vmul.f32 %v1034, %v1034
      %v1037 = vmul.f32 %v1035, %v1035
      %v1038 = vsel %vm519, %v1036, 0.0
      %1039 = vadd.xlane.f32.xlu0 %v1038
      %v1040 = vpop.xlane.xlu0 %1039
      %v1041 = vsel %vm519, %v1037, 0.0
      %1042 = vadd.xlane.f32.xlu0 %v1041
      %v1043 = vpop.xlane.xlu0 %1042
      %v1044 = vmul.f32 %v1040, %v526
      %v1045 = vmul.f32 %v1043, %v526
      %v1046 = vadd.f32 %v1044, 1e-05
      %v1047 = vadd.f32 %v1045, 1e-05
      %v1048 = vrsqrt.pop %v1046
      %v1049 = vrsqrt.pop %v1047
      %v1050 = vmul.f32 %v1034, %v1048
      %v1051 = vmul.f32 %v1035, %v1049
      %v1052 = vlaneseq
      %v1053 = vshrl.u32 %v1052, 7
      %v1054 = vsub.s32 0, %v1053
      %v1055 = vrot.slane %v1025, %v1054
      %v1056 = vmul.f32 %v1050, %v1055
      %v1057 = vmul.f32 %v1051, %v1055
      %v1058 = vlaneseq
      %v1059 = vshrl.u32 %v1058, 7
      %v1060 = vsub.s32 1, %v1059
      %v1061 = vrot.slane %v1025, %v1060
      %v1062 = vadd.f32 %v1056, %v1061
      %v1063 = vadd.f32 %v1057, %v1061
      %v1064 = vld [vmem:[%s11] sm:$0xff]
      %v1065 = vld [vmem:[%s11 + $0x8] sm:$0xff]
      %v1066 = vld [vmem:[%s11 + $0x10] sm:$0xff]
      %v1067 = vld [vmem:[%s11 + $0x18] sm:$0xff]
      %v1068 = vld [vmem:[%s11 + $0x20] sm:$0xff]
      %v1069 = vld [vmem:[%s11 + $0x28] sm:$0xff]
      %v1070 = vld [vmem:[%s11 + $0x30] sm:$0xff]
      %v1071 = vld [vmem:[%s11 + $0x38] sm:$0xff]
      %v1072 = vpack.c.bf16 %v1063, %v1062
      %v1073 = vpack.c.bf16 %v1065, %v1064
      %v1074 = vpack.c.bf16 %v1067, %v1066
      %v1075 = vpack.c.bf16 %v1069, %v1068
      %v1076 = vpack.c.bf16 %v1071, %v1070
      %v1077 = vld [vmem:[%s12] sm:$0x1]
      %v1079 = vlaneseq
      %v1080 = vshrl.u32 %v1079, 7
      %v1081 = vsub.s32 0, %v1080
      %v1082 = vrot.slane %v1077, %v1081
      %v1085 = vsel %vm519, %v1072, 0
      %1087 = vmatprep.subr.bf16.mxu0 0
      %1088 = vmatpush1.bf16.msra.mxu0 %v1073
      %1089 = vmatprep.subr.bf16.mxu0 0
      %1090 = vmatpush1.bf16.msra.mxu0 %v1074
      %1091 = vmatprep.subr.bf16.mxu0 0
      %1092 = vmatpush1.bf16.msra.mxu0 %v1075
      %1093 = vmatprep.subr.bf16.mxu0 0
      %1094 = vmatpush1.bf16.msra.mxu0 %v1076
      %1095 = vmatprep.subr.bf16.mxu0 0
      %1096 = vmatpush1.bf16.msra.mxu0 0
      %1097 = vmatprep.subr.bf16.mxu0 0
      %1098 = vmatpush1.bf16.msra.mxu0 0
      %1099 = vmatprep.subr.bf16.mxu0 0
      %1100 = vmatpush1.bf16.msra.mxu0 0
      %1101 = vmatprep.subr.bf16.mxu0 0
      %1102 = vmatpush1.bf16.msra.mxu0 0
      %1103 = vmatprep.subr.bf16.mxu0 0
      %1104 = vmatpush1.bf16.msra.mxu0 0
      %1105 = vmatprep.subr.bf16.mxu0 0
      %1106 = vmatpush1.bf16.msra.mxu0 0
      %1107 = vmatprep.subr.bf16.mxu0 0
      %1108 = vmatpush1.bf16.msra.mxu0 0
      %1109 = vmatprep.subr.bf16.mxu0 0
      %1110 = vmatpush1.bf16.msra.mxu0 0
      %1111 = vmatprep.subr.bf16.mxu0 0
      %1112 = vmatpush1.bf16.msra.mxu0 0
      %1113 = vmatprep.subr.bf16.mxu0 0
      %1114 = vmatpush1.bf16.msra.mxu0 0
      %1115 = vmatprep.subr.bf16.mxu0 0
      %1116 = vmatpush1.bf16.msra.mxu0 0
      %1117 = vmatprep.subr.bf16.mxu0 0
      %1118 = vmatpush1.bf16.msra.mxu0 0
      %1119 = vmatprep.mubr.bf16.mxu0 0
      %1120 = vmatmul.mubr.bf16.gmra.mrb[0].mxu0 %v1085
      %v1121 = vpop.f32.mrb[0].mxu0
      %v1122 = vadd.f32 %v1082, %v1121
      %v1123 = vpop.f32.mrb[0].mxu0
      %v1124 = vpop.f32.mrb[0].mxu0
      %v1125 = vadd.f32 %v1082, %v1124
      %v1126 = vpop.f32.mrb[0].mxu0
      %1127 = vdwg.mxu0
      %v1128 = vmul.f32 %v1122, 0.5
      %v1129 = vmul.f32 %v1125, 0.5
      %v1130 = vmul.f32 %v1122, 0.044715
      %v1131 = vmul.f32 %v1125, 0.044715
      %v1132 = vmul.f32 %v1130, %v1122
      %v1133 = vmul.f32 %v1131, %v1125
      %v1134 = vmul.f32 %v1132, %v1122
      %v1135 = vmul.f32 %v1133, %v1125
      %v1136 = vadd.f32 %v1122, %v1134
      %v1137 = vadd.f32 %v1125, %v1135
      %v1138 = vmul.f32 %v1136, 0.7978846
      %v1139 = vmul.f32 %v1137, 0.7978846
      %v1140 = vtanh.pop %v1138
      %v1141 = vtanh.pop %v1139
      %v1142 = vadd.f32 %v1140, 1.0
      %v1143 = vadd.f32 %v1141, 1.0
      %v1144 = vmul.f32 %v1128, %v1142
      %v1145 = vmul.f32 %v1129, %v1143
      %v1146 = vld [vmem:[%s13] sm:$0xff]
      %v1147 = vld [vmem:[%s13 + $0x8] sm:$0xff]
      %v1148 = vld [vmem:[%s13 + $0x10] sm:$0xff]
      %v1149 = vld [vmem:[%s13 + $0x18] sm:$0xff]
      %v1150 = vld [vmem:[%s13 + $0x20] sm:$0xff]
      %v1151 = vld [vmem:[%s13 + $0x28] sm:$0xff]
      %v1152 = vld [vmem:[%s13 + $0x30] sm:$0xff]
      %v1153 = vld [vmem:[%s13 + $0x38] sm:$0xff]
      %v1154 = vld [vmem:[%s13 + $0x40] sm:$0xff]
      %v1155 = vld [vmem:[%s13 + $0x48] sm:$0xff]
      %v1156 = vld [vmem:[%s13 + $0x50] sm:$0xff]
      %v1157 = vld [vmem:[%s13 + $0x58] sm:$0xff]
      %v1158 = vld [vmem:[%s13 + $0x60] sm:$0xff]
      %v1159 = vld [vmem:[%s13 + $0x68] sm:$0xff]
      %v1160 = vld [vmem:[%s13 + $0x70] sm:$0xff]
      %v1161 = vld [vmem:[%s13 + $0x78] sm:$0xff]
      %v1162 = vpack.c.bf16 %v1145, %v1144
      %v1163 = vpack.c.bf16 %v1147, %v1146
      %v1164 = vpack.c.bf16 %v1149, %v1148
      %v1165 = vpack.c.bf16 %v1151, %v1150
      %v1166 = vpack.c.bf16 %v1153, %v1152
      %v1167 = vpack.c.bf16 %v1155, %v1154
      %v1168 = vpack.c.bf16 %v1157, %v1156
      %v1169 = vpack.c.bf16 %v1159, %v1158
      %v1170 = vpack.c.bf16 %v1161, %v1160
      %v1171 = vld [vmem:[%s14] sm:$0x1]
      %v1173 = vlaneseq
      %v1174 = vshrl.u32 %v1173, 7
      %v1175 = vsub.s32 0, %v1174
      %v1176 = vrot.slane %v1171, %v1175
      %1178 = vmatprep.subr.bf16.mxu0 0
      %1179 = vmatpush1.bf16.msra.mxu0 %v1163
      %1180 = vmatprep.subr.bf16.mxu0 0
      %1181 = vmatpush1.bf16.msra.mxu0 %v1164
      %1182 = vmatprep.subr.bf16.mxu0 0
      %1183 = vmatpush1.bf16.msra.mxu0 %v1165
      %1184 = vmatprep.subr.bf16.mxu0 0
      %1185 = vmatpush1.bf16.msra.mxu0 %v1166
      %1186 = vmatprep.subr.bf16.mxu0 0
      %1187 = vmatpush1.bf16.msra.mxu0 %v1167
      %1188 = vmatprep.subr.bf16.mxu0 0
      %1189 = vmatpush1.bf16.msra.mxu0 %v1168
      %1190 = vmatprep.subr.bf16.mxu0 0
      %1191 = vmatpush1.bf16.msra.mxu0 %v1169
      %1192 = vmatprep.subr.bf16.mxu0 0
      %1193 = vmatpush1.bf16.msra.mxu0 %v1170
      %1194 = vmatprep.subr.bf16.mxu0 0
      %1195 = vmatpush1.bf16.msra.mxu0 0
      %1196 = vmatprep.subr.bf16.mxu0 0
      %1197 = vmatpush1.bf16.msra.mxu0 0
      %1198 = vmatprep.subr.bf16.mxu0 0
      %1199 = vmatpush1.bf16.msra.mxu0 0
      %1200 = vmatprep.subr.bf16.mxu0 0
      %1201 = vmatpush1.bf16.msra.mxu0 0
      %1202 = vmatprep.subr.bf16.mxu0 0
      %1203 = vmatpush1.bf16.msra.mxu0 0
      %1204 = vmatprep.subr.bf16.mxu0 0
      %1205 = vmatpush1.bf16.msra.mxu0 0
      %1206 = vmatprep.subr.bf16.mxu0 0
      %1207 = vmatpush1.bf16.msra.mxu0 0
      %1208 = vmatprep.subr.bf16.mxu0 0
      %1209 = vmatpush1.bf16.msra.mxu0 0
      %1210 = vmatprep.mubr.bf16.mxu0 0
      %1211 = vmatmul.mubr.bf16.gmra.mrb[0].mxu0 %v1162
      %v1212 = vpop.f32.mrb[0].mxu0
      %v1213 = vadd.f32 %v1176, %v1212
      %v1214 = vpop.f32.mrb[0].mxu0
      %v1215 = vpop.f32.mrb[0].mxu0
      %v1216 = vadd.f32 %v1176, %v1215
      %v1217 = vpop.f32.mrb[0].mxu0
      %1218 = vdwg.mxu0
      %v1219 = vadd.f32 %v1023, %v1213
      %v1220 = vadd.f32 %v1024, %v1216
      %1221 = vst.msk [vmem:[%s514] sm:$0xff] %vm519, %v1219
      %1222 = vst.msk [vmem:[%s514 + $0x8] sm:$0xff] %vm519, %v1220
      %p1223 = scmp.lt.s32.totalorder %s26, 1
      %s1224 = scalar_select %p1223, %s26, 1
      %s1225 = smul.addr %s1224, 2
      %s1226 = smul.addr %s1225, 8
      %s1227 = scalar_lea.vmem %s15, %s1226
      // Predicated region
      $region81: #{qat_forward.6} parent=79 // pred_check
        %p1228 = pneg %p369
      $region82: #{qat_forward.6} parent=79 // pred_check_branch
        %1230 = sbr.rel (%p1228) target = $region84
      $region83: #{qat_forward.6} parent=79 // pred_region
        _
      $region84: #{qat_forward.6} parent=79 // pred_fallthru
        _
    $region80: #{qat_forward.6} parent=5 // pred_fallthru
      _
    %p1231 = scmp.le.s32.totalorder 2, %s21
    // Predicated region
    $region85: #{qat_forward.6} parent=5 // pred_check
      %p1232 = pneg %p1231
    $region86: #{qat_forward.6} parent=5 // pred_check_branch
      %1234 = sbr.rel (%p1232) target = $region88
    $region87: #{qat_forward.6} parent=5 // pred_region
      %s1235 = ssub.s32 %s21, 2
      // Predicated region
      $region89: #{qat_forward.6} parent=87 // pred_check
        %p1236 = pneg %p375
      $region90: #{qat_forward.6} parent=87 // pred_check_branch
        %1238 = sbr.rel (%p1236) target = $region92
      $region91: #{qat_forward.6} parent=87 // pred_region
        %p1239 = scmp.lt.s32.totalorder %s27, 1
        %s1240 = scalar_select %p1239, %s27, 1
        %s1241 = smul.addr %s1240, 2
        %s1242 = smul.addr %s1241, 8
        %s1243 = scalar_lea.vmem %s15, %s1242
      $region92: #{qat_forward.6} parent=87 // pred_fallthru
        _
    $region88: #{qat_forward.6} parent=5 // pred_fallthru
      _
  $region6: #{qat_forward.6} parent=0 // loop_footer
    %s25 = sadd.s32 1, %s21
  $region7: #{qat_forward.6} parent=0 // loop_footer_branch
    %20 = sbr.rel target = $region3
  $region8: #{qat_forward.6} parent=0 // loop_exit
    _

</llo_original>
